<compile_context>
chip_gen: v7x
topology: tpu7x:2x2x1
jax: 0.10.0
libtpu: 0.0.40
codegen_flags: <defaults>
</compile_context>

<pallas_src>
import jax
import jax.numpy as jnp
from jax import lax
from jax.experimental import pallas as pl
from jax.experimental.pallas import tpu as pltpu

# ---- model hyper-parameters (small, consistent with the module's __init__) ----
VOCAB = 50
EMB = 32            # embedding_dim
HID = 32            # hidden_dim
NFILT = 16          # num_filters
FILTER_SIZES = (3, 4, 5)
NCLASS = 2
BATCH = 2
SEQ = 8

KMIN = min(FILTER_SIZES)
KMAX = max(FILTER_SIZES)
VPAD = -(-VOCAB // 128) * 128          # vocab padded to a lane multiple (128)
NF3 = NFILT * len(FILTER_SIZES)        # fused conv output channels (48)


# ----------------------------- Pallas kernel -----------------------------
def rnn_cnn_kernel(ids_ref, xtab_ref, whh_ref, wconv_ref, bconv_ref,
                   mask_ref, wfc_ref, bfc_ref, out_ref, rnn_s):
    S, B = ids_ref.shape               # ids block is time-major (S, B_tile)
    H = whh_ref.shape[0]
    V = xtab_ref.shape[0]
    LMAX = S - KMIN + 1                # number of conv windows (== L of the K=3 conv)

    # ---- one-hot gather of the pre-baked input projection (emb@Wih^T + b_ih + b_hh) ----
    ids = ids_ref[...]                                                # (S, B) int32
    iota = lax.broadcasted_iota(jnp.int32, (S, B, V), 2)
    onehot = (ids[:, :, None] == iota).astype(jnp.float32)            # (S, B, V)
    x_proj = jnp.dot(onehot, xtab_ref[...],
                     preferred_element_type=jnp.float32)              # (S, B, H)

    # ---- zero the padded tail timesteps used by the fused conv window ----
    rnn_s[S] = jnp.zeros((B, H), jnp.float32)
    rnn_s[S + 1] = jnp.zeros((B, H), jnp.float32)

    # ---- Elman RNN (tanh); serial chain only carries tanh(x_t + h @ W_hh^T) ----
    whh = whh_ref[...]                                                 # resident (H, H)
    h = jnp.zeros((B, H), jnp.float32)
    for t in range(S):                 # S=8: full unroll is fine for the LLO scheduler
        h = jnp.tanh(x_proj[t] + jnp.dot(h, whh, preferred_element_type=jnp.float32))
        rnn_s[t] = h                   # leading-index contiguous store
    rnn_feat = h                       # == rnn_output[:, -1, :]

    # ---- fused Conv1d (K=3,4,5 zero-padded to K=5): one im2col matmul + masked max ----
    hist = rnn_s[...]                                                  # (S+2, B, H)
    cols = jnp.concatenate([hist[k:k + LMAX] for k in range(KMAX)],
                           axis=2)                                     # (LMAX, B, KMAX*H)
    acc = jnp.dot(cols, wconv_ref[...],
                  preferred_element_type=jnp.float32)                  # (LMAX, B, 3F)
    pooled = jnp.max(acc + mask_ref[...], axis=0)                      # (B, 3F)
    cnn_feat = pooled + bconv_ref[...]                                 # bias after max

    # ---- concat features + final Linear ----
    feats = jnp.concatenate([rnn_feat, cnn_feat], axis=1)              # (B, H + 3F)
    logits = jnp.dot(feats, wfc_ref[...],
                     preferred_element_type=jnp.float32) + bfc_ref[...]
    out_ref[...] = logits.astype(out_ref.dtype)


# ----------------------------- parameter init (PyTorch-style layouts) -----------------------------
def init_params(key):
    ks = jax.random.split(key, 13)

    def u(k, shape, scale):
        return jax.random.uniform(k, shape, jnp.float32, -scale, scale)

    emb_table = jax.random.normal(ks[0], (VOCAB, EMB), jnp.float32)   # nn.Embedding
    s_rnn = 1.0 / (HID ** 0.5)
    w_ih = u(ks[1], (HID, EMB), s_rnn)
    w_hh = u(ks[2], (HID, HID), s_rnn)
    b_ih = u(ks[3], (HID,), s_rnn)
    b_hh = u(ks[4], (HID,), s_rnn)
    convs = []
    for i, fs in enumerate(FILTER_SIZES):
        s = 1.0 / ((HID * fs) ** 0.5)
        w = u(ks[5 + 2 * i], (NFILT, HID, fs), s)   # Conv1d weight (F, C_in, K)
        b = u(ks[6 + 2 * i], (NFILT,), s)
        convs.append((w, b))
    in_dim = HID + len(FILTER_SIZES) * NFILT
    s_fc = 1.0 / (in_dim ** 0.5)
    w_fc = u(ks[11], (NCLASS, in_dim), s_fc)
    b_fc = u(ks[12], (NCLASS,), s_fc)
    return dict(emb=emb_table, w_ih=w_ih, w_hh=w_hh, b_ih=b_ih, b_hh=b_hh,
                convs=convs, w_fc=w_fc, b_fc=b_fc)


# ---------- one-time weight layout prep (hoisted out of the per-call path) ----------
def prepare_params(params):
    # Pre-baked input projection table: x_table[v] = emb[v] @ W_ih^T + (b_ih + b_hh),
    # zero-padded along vocab to a lane multiple for the one-hot gather matmul.
    xtab = params['emb'] @ params['w_ih'].T + (params['b_ih'] + params['b_hh'])[None, :]
    xtab_pad = jnp.zeros((VPAD, HID), jnp.float32).at[:VOCAB, :].set(xtab)

    # Fused conv weights: (F, H, K) -> (K*H, F) (row index k*H + h), zero-padded to
    # K=KMAX, concatenated along the filter axis in torch.cat([c3, c4, c5]) order.
    w_cols, b_cols, lens = [], [], []
    for (w, b) in params['convs']:
        K = w.shape[2]
        wk = jnp.transpose(w, (2, 1, 0)).reshape(K * HID, NFILT)
        wk = jnp.concatenate(
            [wk, jnp.zeros(((KMAX - K) * HID, NFILT), jnp.float32)], axis=0)
        w_cols.append(wk)
        b_cols.append(b)
        lens.append(SEQ - K + 1)
    wconv = jnp.concatenate(w_cols, axis=1)                            # (KMAX*H, 3F)
    bconv = jnp.concatenate(b_cols)[None, :]                           # (1, 3F)

    # Window-validity mask: window j is only valid for a filter of size K if j < S-K+1.
    LMAX = SEQ - KMIN + 1
    pos = jnp.arange(LMAX, dtype=jnp.int32)[:, None]                   # (LMAX, 1)
    valid = jnp.concatenate(
        [jnp.full((NFILT,), l, jnp.int32) for l in lens])[None, :]     # (1, 3F)
    mask = jnp.where(pos < valid, 0.0, -1e30).astype(jnp.float32)[:, None, :]  # (LMAX,1,3F)

    return dict(
        xtab=xtab_pad,                                                 # (VPAD, H)
        whh=params['w_hh'].T,                                          # (H, H)
        wconv=wconv, bconv=bconv, mask=mask,
        wfc=params['w_fc'].T,                                          # (H + 3F, C)
        bfc=params['b_fc'][None, :],                                   # (1, C)
    )


# ----------------------------- Pallas wrapper -----------------------------
def forward(prep, x):
    B, S = x.shape
    ids_tm = x.astype(jnp.int32).T                     # (S, B) time-major token ids
    bt = B                                             # batch tile (== B at these sizes)
    grid = (pl.cdiv(B, bt),)
    LMAX = S - KMIN + 1

    def full(shape):                                   # grid-invariant resident block
        return pl.BlockSpec(shape, lambda i, _s=shape: tuple(0 for _ in _s))

    return pl.pallas_call(
        rnn_cnn_kernel,
        out_shape=jax.ShapeDtypeStruct((B, NCLASS), jnp.float32),
        grid=grid,
        in_specs=[
            pl.BlockSpec((S, bt), lambda i: (0, i)),   # token ids (time-major)
            full((VPAD, HID)),                         # pre-baked x_table
            full((HID, HID)),                          # W_hh^T
            full((KMAX * HID, NF3)),                   # fused conv weight
            full((1, NF3)),                            # fused conv bias
            full((LMAX, 1, NF3)),                      # window-validity mask
            full((HID + NF3, NCLASS)),                 # fc weight
            full((1, NCLASS)),                         # fc bias
        ],
        out_specs=pl.BlockSpec((bt, NCLASS), lambda i: (i, 0)),
        scratch_shapes=[
            pltpu.VMEM((S + KMAX - KMIN, bt, HID), jnp.float32),  # RNN history (+2 zero rows)
        ],
        compiler_params=pltpu.CompilerParams(dimension_semantics=("parallel",)),
    )(ids_tm, prep['xtab'], prep['whh'], prep['wconv'], prep['bconv'],
      prep['mask'], prep['wfc'], prep['bfc'])


# ----------------------------- pure-JAX reference -----------------------------
def reference_forward(params, x):
    emb = jnp.take(params['emb'], x, axis=0)
    B, S, _ = emb.shape
    h = jnp.zeros((B, HID), jnp.float32)
    hs = []
    for t in range(S):
        h = jnp.tanh(emb[:, t, :] @ params['w_ih'].T + params['b_ih']
                     + h @ params['w_hh'].T + params['b_hh'])
        hs.append(h)
    rnn_out = jnp.stack(hs, axis=1)                     # (B, S, H)
    feats = [hs[-1]]
    xp = jnp.transpose(rnn_out, (0, 2, 1))              # (B, H, S)  (PyTorch NCL)
    for (w, b) in params['convs']:
        K = w.shape[2]
        L = S - K + 1
        cols = jnp.stack([xp[:, :, j:j + K] for j in range(L)], axis=1)  # (B, L, H, K)
        out = jnp.einsum('blck,fck->blf', cols, w) + b[None, None, :]
        feats.append(jnp.max(out, axis=1))
    feats = jnp.concatenate(feats, axis=1)
    return feats @ params['w_fc'].T + params['b_fc'][None, :]


if __name__ == "__main__":
    key = jax.random.PRNGKey(0)
    kp, kx = jax.random.split(key)
    params = init_params(kp)
    prep = prepare_params(params)                       # weight layout work done once
    x = jax.random.randint(kx, (BATCH, SEQ), 0, VOCAB, dtype=jnp.int32)

    run = jax.jit(forward)
    logits = run(prep, x)
    jax.block_until_ready(logits)

    ref = reference_forward(params, x)
    assert logits.shape == (BATCH, NCLASS)
    assert jnp.allclose(logits, ref, atol=2e-3, rtol=2e-3), (logits, ref)
    print("KERNEL_OK")
</pallas_src>

<mosaic_0001>
module attributes {stable_mosaic.version = 11 : i64} {
  func.func @rnn_cnn_kernel(%arg0: i32, %arg1: memref<8x2xi32, #tpu.memory_space<vmem>>, %arg2: memref<128x32xf32, #tpu.memory_space<vmem>>, %arg3: memref<32x32xf32, #tpu.memory_space<vmem>>, %arg4: memref<160x48xf32, #tpu.memory_space<vmem>>, %arg5: memref<1x48xf32, #tpu.memory_space<vmem>>, %arg6: memref<6x1x48xf32, #tpu.memory_space<vmem>>, %arg7: memref<80x2xf32, #tpu.memory_space<vmem>>, %arg8: memref<1x2xf32, #tpu.memory_space<vmem>>, %arg9: memref<2x2xf32, #tpu.memory_space<vmem>>, %arg10: memref<10x2x32xf32, #tpu.memory_space<vmem>>) attributes {dimension_semantics = [#tpu.dimension_semantics<parallel>], iteration_bounds = array<i64: 1>, scalar_prefetch = 0 : i64, scratch_operands = 1 : i64, tpu.core_type = #tpu.core_type<tc>, window_params = [{transform_indices = @transform_0, window_bounds = array<i64: 8, 2>}, {pipeline_mode = #tpu.pipeline_mode<synchronous>, transform_indices = @transform_1, window_bounds = array<i64: 128, 32>}, {pipeline_mode = #tpu.pipeline_mode<synchronous>, transform_indices = @transform_2, window_bounds = array<i64: 32, 32>}, {pipeline_mode = #tpu.pipeline_mode<synchronous>, transform_indices = @transform_3, window_bounds = array<i64: 160, 48>}, {pipeline_mode = #tpu.pipeline_mode<synchronous>, transform_indices = @transform_4, window_bounds = array<i64: 1, 48>}, {pipeline_mode = #tpu.pipeline_mode<synchronous>, transform_indices = @transform_5, window_bounds = array<i64: 6, 1, 48>}, {pipeline_mode = #tpu.pipeline_mode<synchronous>, transform_indices = @transform_6, window_bounds = array<i64: 80, 2>}, {pipeline_mode = #tpu.pipeline_mode<synchronous>, transform_indices = @transform_7, window_bounds = array<i64: 1, 2>}, {transform_indices = @transform_8, window_bounds = array<i64: 2, 2>}]} {
    %c0 = arith.constant 0 : index
    %c0_0 = arith.constant 0 : index
    %0 = vector.load %arg1[%c0, %c0_0] : memref<8x2xi32, #tpu.memory_space<vmem>>, vector<8x2xi32>
    %1 = tpu.iota {dimensions = array<i32: 2>} : vector<8x2x128xi32>
    %2 = vector.shape_cast %0 : vector<8x2xi32> to vector<8x2x1xi32>
    %3 = vector.broadcast %2 : vector<8x2x1xi32> to vector<8x2x128xi32>
    %4 = arith.cmpi eq, %3, %1 : vector<8x2x128xi32>
    %5 = arith.extui %4 : vector<8x2x128xi1> to vector<8x2x128xi32>
    %6 = arith.sitofp %5 : vector<8x2x128xi32> to vector<8x2x128xf32>
    %c0_1 = arith.constant 0 : index
    %c0_2 = arith.constant 0 : index
    %7 = vector.load %arg2[%c0_1, %c0_2] : memref<128x32xf32, #tpu.memory_space<vmem>>, vector<128x32xf32>
    %cst = arith.constant dense<0.000000e+00> : vector<8x2x32xf32>
    %8 = tpu.matmul %6, %7, %cst {dimension_numbers = #tpu.dot_dimension_numbers<[2], [0], [0, 1], [1], [0, 0, 0, 1, 1, 1], [], []>} : vector<8x2x128xf32>, vector<128x32xf32>, vector<8x2x32xf32> -> vector<8x2x32xf32>
    %cst_3 = arith.constant 0.000000e+00 : f32
    %9 = vector.broadcast %cst_3 : f32 to vector<2x32xf32>
    %c8 = arith.constant 8 : index
    %c0_4 = arith.constant 0 : index
    %c0_5 = arith.constant 0 : index
    %10 = vector.load %arg10[%c8, %c0_4, %c0_5] : memref<10x2x32xf32, #tpu.memory_space<vmem>>, vector<1x2x32xf32>
    %11 = vector.shape_cast %10 : vector<1x2x32xf32> to vector<2x32xf32>
    %12 = vector.shape_cast %9 : vector<2x32xf32> to vector<1x2x32xf32>
    tpu.vector_store %arg10[%c8, %c0_4, %c0_5], %12 {strides = array<i32>} : memref<10x2x32xf32, #tpu.memory_space<vmem>>, vector<1x2x32xf32>,
    %cst_6 = arith.constant 0.000000e+00 : f32
    %13 = vector.broadcast %cst_6 : f32 to vector<2x32xf32>
    %c9 = arith.constant 9 : index
    %c0_7 = arith.constant 0 : index
    %c0_8 = arith.constant 0 : index
    %14 = vector.load %arg10[%c9, %c0_7, %c0_8] : memref<10x2x32xf32, #tpu.memory_space<vmem>>, vector<1x2x32xf32>
    %15 = vector.shape_cast %14 : vector<1x2x32xf32> to vector<2x32xf32>
    %16 = vector.shape_cast %13 : vector<2x32xf32> to vector<1x2x32xf32>
    tpu.vector_store %arg10[%c9, %c0_7, %c0_8], %16 {strides = array<i32>} : memref<10x2x32xf32, #tpu.memory_space<vmem>>, vector<1x2x32xf32>,
    %c0_9 = arith.constant 0 : index
    %c0_10 = arith.constant 0 : index
    %17 = vector.load %arg3[%c0_9, %c0_10] : memref<32x32xf32, #tpu.memory_space<vmem>>, vector<32x32xf32>
    %cst_11 = arith.constant 0.000000e+00 : f32
    %18 = vector.broadcast %cst_11 : f32 to vector<2x32xf32>
    %19 = vector.extract_strided_slice %8 {offsets = [0, 0, 0], sizes = [1, 2, 32], strides = [1, 1, 1]} : vector<8x2x32xf32> to vector<1x2x32xf32>
    %20 = vector.shape_cast %19 : vector<1x2x32xf32> to vector<2x32xf32>
    %cst_12 = arith.constant dense<0.000000e+00> : vector<2x32xf32>
    %21 = tpu.matmul %18, %17, %cst_12 {dimension_numbers = #tpu.dot_dimension_numbers<[1], [0], [0], [1], [0, 0, 1, 1], [], []>} : vector<2x32xf32>, vector<32x32xf32>, vector<2x32xf32> -> vector<2x32xf32>
    %22 = arith.addf %20, %21 : vector<2x32xf32>
    %23 = math.tanh %22 : vector<2x32xf32>
    %c0_13 = arith.constant 0 : index
    %c0_14 = arith.constant 0 : index
    %c0_15 = arith.constant 0 : index
    %24 = vector.load %arg10[%c0_13, %c0_14, %c0_15] : memref<10x2x32xf32, #tpu.memory_space<vmem>>, vector<1x2x32xf32>
    %25 = vector.shape_cast %24 : vector<1x2x32xf32> to vector<2x32xf32>
    %26 = vector.shape_cast %23 : vector<2x32xf32> to vector<1x2x32xf32>
    tpu.vector_store %arg10[%c0_13, %c0_14, %c0_15], %26 {strides = array<i32>} : memref<10x2x32xf32, #tpu.memory_space<vmem>>, vector<1x2x32xf32>,
    %27 = vector.extract_strided_slice %8 {offsets = [1, 0, 0], sizes = [1, 2, 32], strides = [1, 1, 1]} : vector<8x2x32xf32> to vector<1x2x32xf32>
    %28 = vector.shape_cast %27 : vector<1x2x32xf32> to vector<2x32xf32>
    %cst_16 = arith.constant dense<0.000000e+00> : vector<2x32xf32>
    %29 = tpu.matmul %23, %17, %cst_16 {dimension_numbers = #tpu.dot_dimension_numbers<[1], [0], [0], [1], [0, 0, 1, 1], [], []>} : vector<2x32xf32>, vector<32x32xf32>, vector<2x32xf32> -> vector<2x32xf32>
    %30 = arith.addf %28, %29 : vector<2x32xf32>
    %31 = math.tanh %30 : vector<2x32xf32>
    %c1 = arith.constant 1 : index
    %c0_17 = arith.constant 0 : index
    %c0_18 = arith.constant 0 : index
    %32 = vector.load %arg10[%c1, %c0_17, %c0_18] : memref<10x2x32xf32, #tpu.memory_space<vmem>>, vector<1x2x32xf32>
    %33 = vector.shape_cast %32 : vector<1x2x32xf32> to vector<2x32xf32>
    %34 = vector.shape_cast %31 : vector<2x32xf32> to vector<1x2x32xf32>
    tpu.vector_store %arg10[%c1, %c0_17, %c0_18], %34 {strides = array<i32>} : memref<10x2x32xf32, #tpu.memory_space<vmem>>, vector<1x2x32xf32>,
    %35 = vector.extract_strided_slice %8 {offsets = [2, 0, 0], sizes = [1, 2, 32], strides = [1, 1, 1]} : vector<8x2x32xf32> to vector<1x2x32xf32>
    %36 = vector.shape_cast %35 : vector<1x2x32xf32> to vector<2x32xf32>
    %cst_19 = arith.constant dense<0.000000e+00> : vector<2x32xf32>
    %37 = tpu.matmul %31, %17, %cst_19 {dimension_numbers = #tpu.dot_dimension_numbers<[1], [0], [0], [1], [0, 0, 1, 1], [], []>} : vector<2x32xf32>, vector<32x32xf32>, vector<2x32xf32> -> vector<2x32xf32>
    %38 = arith.addf %36, %37 : vector<2x32xf32>
    %39 = math.tanh %38 : vector<2x32xf32>
    %c2 = arith.constant 2 : index
    %c0_20 = arith.constant 0 : index
    %c0_21 = arith.constant 0 : index
    %40 = vector.load %arg10[%c2, %c0_20, %c0_21] : memref<10x2x32xf32, #tpu.memory_space<vmem>>, vector<1x2x32xf32>
    %41 = vector.shape_cast %40 : vector<1x2x32xf32> to vector<2x32xf32>
    %42 = vector.shape_cast %39 : vector<2x32xf32> to vector<1x2x32xf32>
    tpu.vector_store %arg10[%c2, %c0_20, %c0_21], %42 {strides = array<i32>} : memref<10x2x32xf32, #tpu.memory_space<vmem>>, vector<1x2x32xf32>,
    %43 = vector.extract_strided_slice %8 {offsets = [3, 0, 0], sizes = [1, 2, 32], strides = [1, 1, 1]} : vector<8x2x32xf32> to vector<1x2x32xf32>
    %44 = vector.shape_cast %43 : vector<1x2x32xf32> to vector<2x32xf32>
    %cst_22 = arith.constant dense<0.000000e+00> : vector<2x32xf32>
    %45 = tpu.matmul %39, %17, %cst_22 {dimension_numbers = #tpu.dot_dimension_numbers<[1], [0], [0], [1], [0, 0, 1, 1], [], []>} : vector<2x32xf32>, vector<32x32xf32>, vector<2x32xf32> -> vector<2x32xf32>
    %46 = arith.addf %44, %45 : vector<2x32xf32>
    %47 = math.tanh %46 : vector<2x32xf32>
    %c3 = arith.constant 3 : index
    %c0_23 = arith.constant 0 : index
    %c0_24 = arith.constant 0 : index
    %48 = vector.load %arg10[%c3, %c0_23, %c0_24] : memref<10x2x32xf32, #tpu.memory_space<vmem>>, vector<1x2x32xf32>
    %49 = vector.shape_cast %48 : vector<1x2x32xf32> to vector<2x32xf32>
    %50 = vector.shape_cast %47 : vector<2x32xf32> to vector<1x2x32xf32>
    tpu.vector_store %arg10[%c3, %c0_23, %c0_24], %50 {strides = array<i32>} : memref<10x2x32xf32, #tpu.memory_space<vmem>>, vector<1x2x32xf32>,
    %51 = vector.extract_strided_slice %8 {offsets = [4, 0, 0], sizes = [1, 2, 32], strides = [1, 1, 1]} : vector<8x2x32xf32> to vector<1x2x32xf32>
    %52 = vector.shape_cast %51 : vector<1x2x32xf32> to vector<2x32xf32>
    %cst_25 = arith.constant dense<0.000000e+00> : vector<2x32xf32>
    %53 = tpu.matmul %47, %17, %cst_25 {dimension_numbers = #tpu.dot_dimension_numbers<[1], [0], [0], [1], [0, 0, 1, 1], [], []>} : vector<2x32xf32>, vector<32x32xf32>, vector<2x32xf32> -> vector<2x32xf32>
    %54 = arith.addf %52, %53 : vector<2x32xf32>
    %55 = math.tanh %54 : vector<2x32xf32>
    %c4 = arith.constant 4 : index
    %c0_26 = arith.constant 0 : index
    %c0_27 = arith.constant 0 : index
    %56 = vector.load %arg10[%c4, %c0_26, %c0_27] : memref<10x2x32xf32, #tpu.memory_space<vmem>>, vector<1x2x32xf32>
    %57 = vector.shape_cast %56 : vector<1x2x32xf32> to vector<2x32xf32>
    %58 = vector.shape_cast %55 : vector<2x32xf32> to vector<1x2x32xf32>
    tpu.vector_store %arg10[%c4, %c0_26, %c0_27], %58 {strides = array<i32>} : memref<10x2x32xf32, #tpu.memory_space<vmem>>, vector<1x2x32xf32>,
    %59 = vector.extract_strided_slice %8 {offsets = [5, 0, 0], sizes = [1, 2, 32], strides = [1, 1, 1]} : vector<8x2x32xf32> to vector<1x2x32xf32>
    %60 = vector.shape_cast %59 : vector<1x2x32xf32> to vector<2x32xf32>
    %cst_28 = arith.constant dense<0.000000e+00> : vector<2x32xf32>
    %61 = tpu.matmul %55, %17, %cst_28 {dimension_numbers = #tpu.dot_dimension_numbers<[1], [0], [0], [1], [0, 0, 1, 1], [], []>} : vector<2x32xf32>, vector<32x32xf32>, vector<2x32xf32> -> vector<2x32xf32>
    %62 = arith.addf %60, %61 : vector<2x32xf32>
    %63 = math.tanh %62 : vector<2x32xf32>
    %c5 = arith.constant 5 : index
    %c0_29 = arith.constant 0 : index
    %c0_30 = arith.constant 0 : index
    %64 = vector.load %arg10[%c5, %c0_29, %c0_30] : memref<10x2x32xf32, #tpu.memory_space<vmem>>, vector<1x2x32xf32>
    %65 = vector.shape_cast %64 : vector<1x2x32xf32> to vector<2x32xf32>
    %66 = vector.shape_cast %63 : vector<2x32xf32> to vector<1x2x32xf32>
    tpu.vector_store %arg10[%c5, %c0_29, %c0_30], %66 {strides = array<i32>} : memref<10x2x32xf32, #tpu.memory_space<vmem>>, vector<1x2x32xf32>,
    %67 = vector.extract_strided_slice %8 {offsets = [6, 0, 0], sizes = [1, 2, 32], strides = [1, 1, 1]} : vector<8x2x32xf32> to vector<1x2x32xf32>
    %68 = vector.shape_cast %67 : vector<1x2x32xf32> to vector<2x32xf32>
    %cst_31 = arith.constant dense<0.000000e+00> : vector<2x32xf32>
    %69 = tpu.matmul %63, %17, %cst_31 {dimension_numbers = #tpu.dot_dimension_numbers<[1], [0], [0], [1], [0, 0, 1, 1], [], []>} : vector<2x32xf32>, vector<32x32xf32>, vector<2x32xf32> -> vector<2x32xf32>
    %70 = arith.addf %68, %69 : vector<2x32xf32>
    %71 = math.tanh %70 : vector<2x32xf32>
    %c6 = arith.constant 6 : index
    %c0_32 = arith.constant 0 : index
    %c0_33 = arith.constant 0 : index
    %72 = vector.load %arg10[%c6, %c0_32, %c0_33] : memref<10x2x32xf32, #tpu.memory_space<vmem>>, vector<1x2x32xf32>
    %73 = vector.shape_cast %72 : vector<1x2x32xf32> to vector<2x32xf32>
    %74 = vector.shape_cast %71 : vector<2x32xf32> to vector<1x2x32xf32>
    tpu.vector_store %arg10[%c6, %c0_32, %c0_33], %74 {strides = array<i32>} : memref<10x2x32xf32, #tpu.memory_space<vmem>>, vector<1x2x32xf32>,
    %75 = vector.extract_strided_slice %8 {offsets = [7, 0, 0], sizes = [1, 2, 32], strides = [1, 1, 1]} : vector<8x2x32xf32> to vector<1x2x32xf32>
    %76 = vector.shape_cast %75 : vector<1x2x32xf32> to vector<2x32xf32>
    %cst_34 = arith.constant dense<0.000000e+00> : vector<2x32xf32>
    %77 = tpu.matmul %71, %17, %cst_34 {dimension_numbers = #tpu.dot_dimension_numbers<[1], [0], [0], [1], [0, 0, 1, 1], [], []>} : vector<2x32xf32>, vector<32x32xf32>, vector<2x32xf32> -> vector<2x32xf32>
    %78 = arith.addf %76, %77 : vector<2x32xf32>
    %79 = math.tanh %78 : vector<2x32xf32>
    %c7 = arith.constant 7 : index
    %c0_35 = arith.constant 0 : index
    %c0_36 = arith.constant 0 : index
    %80 = vector.load %arg10[%c7, %c0_35, %c0_36] : memref<10x2x32xf32, #tpu.memory_space<vmem>>, vector<1x2x32xf32>
    %81 = vector.shape_cast %80 : vector<1x2x32xf32> to vector<2x32xf32>
    %82 = vector.shape_cast %79 : vector<2x32xf32> to vector<1x2x32xf32>
    tpu.vector_store %arg10[%c7, %c0_35, %c0_36], %82 {strides = array<i32>} : memref<10x2x32xf32, #tpu.memory_space<vmem>>, vector<1x2x32xf32>,
    %c0_37 = arith.constant 0 : index
    %c0_38 = arith.constant 0 : index
    %c0_39 = arith.constant 0 : index
    %83 = vector.load %arg10[%c0_37, %c0_38, %c0_39] : memref<10x2x32xf32, #tpu.memory_space<vmem>>, vector<10x2x32xf32>
    %84 = vector.extract_strided_slice %83 {offsets = [0, 0, 0], sizes = [6, 2, 32], strides = [1, 1, 1]} : vector<10x2x32xf32> to vector<6x2x32xf32>
    %85 = vector.extract_strided_slice %83 {offsets = [1, 0, 0], sizes = [6, 2, 32], strides = [1, 1, 1]} : vector<10x2x32xf32> to vector<6x2x32xf32>
    %86 = vector.extract_strided_slice %83 {offsets = [2, 0, 0], sizes = [6, 2, 32], strides = [1, 1, 1]} : vector<10x2x32xf32> to vector<6x2x32xf32>
    %87 = vector.extract_strided_slice %83 {offsets = [3, 0, 0], sizes = [6, 2, 32], strides = [1, 1, 1]} : vector<10x2x32xf32> to vector<6x2x32xf32>
    %88 = vector.extract_strided_slice %83 {offsets = [4, 0, 0], sizes = [6, 2, 32], strides = [1, 1, 1]} : vector<10x2x32xf32> to vector<6x2x32xf32>
    %89 = tpu.concatenate %84, %85, %86, %87, %88 in 2 : vector<6x2x32xf32>, vector<6x2x32xf32>, vector<6x2x32xf32>, vector<6x2x32xf32>, vector<6x2x32xf32> -> vector<6x2x160xf32>
    %c0_40 = arith.constant 0 : index
    %c0_41 = arith.constant 0 : index
    %90 = vector.load %arg4[%c0_40, %c0_41] : memref<160x48xf32, #tpu.memory_space<vmem>>, vector<160x48xf32>
    %cst_42 = arith.constant dense<0.000000e+00> : vector<6x2x48xf32>
    %91 = tpu.matmul %89, %90, %cst_42 {dimension_numbers = #tpu.dot_dimension_numbers<[2], [0], [0, 1], [1], [0, 0, 0, 1, 1, 1], [], []>} : vector<6x2x160xf32>, vector<160x48xf32>, vector<6x2x48xf32> -> vector<6x2x48xf32>
    %c0_43 = arith.constant 0 : index
    %c0_44 = arith.constant 0 : index
    %c0_45 = arith.constant 0 : index
    %92 = vector.load %arg6[%c0_43, %c0_44, %c0_45] : memref<6x1x48xf32, #tpu.memory_space<vmem>>, vector<6x1x48xf32>
    %93 = vector.broadcast %92 : vector<6x1x48xf32> to vector<6x2x48xf32>
    %94 = arith.addf %91, %93 : vector<6x2x48xf32>
    %cst_46 = arith.constant dense<0xFF800000> : vector<2x48xf32>
    %95 = vector.multi_reduction <maximumf>, %94, %cst_46 [0] : vector<6x2x48xf32> to vector<2x48xf32>
    %c0_47 = arith.constant 0 : index
    %c0_48 = arith.constant 0 : index
    %96 = vector.load %arg5[%c0_47, %c0_48] : memref<1x48xf32, #tpu.memory_space<vmem>>, vector<1x48xf32>
    %97 = vector.broadcast %96 : vector<1x48xf32> to vector<2x48xf32>
    %98 = arith.addf %95, %97 : vector<2x48xf32>
    %99 = tpu.concatenate %79, %98 in 1 : vector<2x32xf32>, vector<2x48xf32> -> vector<2x80xf32>
    %c0_49 = arith.constant 0 : index
    %c0_50 = arith.constant 0 : index
    %100 = vector.load %arg7[%c0_49, %c0_50] : memref<80x2xf32, #tpu.memory_space<vmem>>, vector<80x2xf32>
    %cst_51 = arith.constant dense<0.000000e+00> : vector<2x2xf32>
    %101 = tpu.matmul %99, %100, %cst_51 {dimension_numbers = #tpu.dot_dimension_numbers<[1], [0], [0], [1], [0, 0, 1, 1], [], []>} : vector<2x80xf32>, vector<80x2xf32>, vector<2x2xf32> -> vector<2x2xf32>
    %c0_52 = arith.constant 0 : index
    %c0_53 = arith.constant 0 : index
    %102 = vector.load %arg8[%c0_52, %c0_53] : memref<1x2xf32, #tpu.memory_space<vmem>>, vector<1x2xf32>
    %103 = vector.broadcast %102 : vector<1x2xf32> to vector<2x2xf32>
    %104 = arith.addf %101, %103 : vector<2x2xf32>
    %c0_54 = arith.constant 0 : index
    %c0_55 = arith.constant 0 : index
    %105 = vector.load %arg9[%c0_54, %c0_55] : memref<2x2xf32, #tpu.memory_space<vmem>>, vector<2x2xf32>
    tpu.vector_store %arg9[%c0_54, %c0_55], %104 {strides = array<i32>} : memref<2x2xf32, #tpu.memory_space<vmem>>, vector<2x2xf32>,
    return
  }
  func.func @transform_0(%arg0: i32) -> (i32, i32) {
    %c0_i32 = arith.constant 0 : i32
    %c0_i32_0 = arith.constant 0 : i32
    return %c0_i32, %arg0 : i32, i32
  }
  func.func @transform_1(%arg0: i32) -> (i32, i32) {
    %c0_i32 = arith.constant 0 : i32
    %c0_i32_0 = arith.constant 0 : i32
    %c0_i32_1 = arith.constant 0 : i32
    return %c0_i32, %c0_i32_0 : i32, i32
  }
  func.func @transform_2(%arg0: i32) -> (i32, i32) {
    %c0_i32 = arith.constant 0 : i32
    %c0_i32_0 = arith.constant 0 : i32
    %c0_i32_1 = arith.constant 0 : i32
    return %c0_i32, %c0_i32_0 : i32, i32
  }
  func.func @transform_3(%arg0: i32) -> (i32, i32) {
    %c0_i32 = arith.constant 0 : i32
    %c0_i32_0 = arith.constant 0 : i32
    %c0_i32_1 = arith.constant 0 : i32
    return %c0_i32, %c0_i32_0 : i32, i32
  }
  func.func @transform_4(%arg0: i32) -> (i32, i32) {
    %c0_i32 = arith.constant 0 : i32
    %c0_i32_0 = arith.constant 0 : i32
    %c0_i32_1 = arith.constant 0 : i32
    return %c0_i32, %c0_i32_0 : i32, i32
  }
  func.func @transform_5(%arg0: i32) -> (i32, i32, i32) {
    %c0_i32 = arith.constant 0 : i32
    %c0_i32_0 = arith.constant 0 : i32
    %c0_i32_1 = arith.constant 0 : i32
    %c0_i32_2 = arith.constant 0 : i32
    return %c0_i32, %c0_i32_0, %c0_i32_1 : i32, i32, i32
  }
  func.func @transform_6(%arg0: i32) -> (i32, i32) {
    %c0_i32 = arith.constant 0 : i32
    %c0_i32_0 = arith.constant 0 : i32
    %c0_i32_1 = arith.constant 0 : i32
    return %c0_i32, %c0_i32_0 : i32, i32
  }
  func.func @transform_7(%arg0: i32) -> (i32, i32) {
    %c0_i32 = arith.constant 0 : i32
    %c0_i32_0 = arith.constant 0 : i32
    %c0_i32_1 = arith.constant 0 : i32
    return %c0_i32, %c0_i32_0 : i32, i32
  }
  func.func @transform_8(%arg0: i32) -> (i32, i32) {
    %c0_i32 = arith.constant 0 : i32
    %c0_i32_0 = arith.constant 0 : i32
    return %arg0, %c0_i32 : i32, i32
  }
}

</mosaic_0001>

<llo_original>
// kernel: forward.1
$region0: #{forward.1}
  #allocation0 [shape = 'u32[]', space=smem, size = 0x4, offset = 0x4, fixed_abs, tag = 'smem constant byte address 0x4 - core index']
  #allocation1 [shape = 'u32[144,128]{1,0:T(1,128)}', space=vmem, size = 0x12000, scoped, tag = 'internal scratch']
  #allocation2 [shape = 'f32[10,2,32]{2,1,0:T(2,128)}', space=vmem, size = 0x2800, scoped, tag = 'scratch operand']
  %s0 = inlined_call_operand.vmem [shape: s32[8,2], index: 0, kind: input, shape index: {}]
  %s1 = inlined_call_operand.vmem [shape: f32[128,32], index: 1, kind: input, shape index: {}]
  %s2 = inlined_call_operand.vmem [shape: f32[32,32], index: 2, kind: input, shape index: {}]
  %s3 = inlined_call_operand.vmem [shape: f32[160,48], index: 3, kind: input, shape index: {}]
  %s4 = inlined_call_operand.vmem [shape: f32[1,48], index: 4, kind: input, shape index: {}]
  %s5 = inlined_call_operand.vmem [shape: f32[6,1,48], index: 5, kind: input, shape index: {}]
  %s6 = inlined_call_operand.vmem [shape: f32[80,2], index: 6, kind: input, shape index: {}]
  %s7 = inlined_call_operand.vmem [shape: f32[1,2], index: 7, kind: input, shape index: {}]
  %s8 = inlined_call_operand.hbm [shape: f32[2,2], index: 8, kind: output, shape index: {}]
  %s9 = sld [smem:[#allocation0]]
  $region42: #{forward.1} parent=0
    _
  %s11 = ssub.s32 1, %s9
  %s12 = scalar_select 0, %s11, %s9
  $region1: #{forward.1} parent=0
    #allocation3 [shape = 'u8[1024]{0}', space=vmem, size = 0x400, scoped, tag = 'output window, operand 0, single buffered']
    #allocation4 [shape = 's32[1]{0}', space=sflag, size = 0x4, scoped, tag = 'scoped memory for forward.1']
    %13 = vsyncpa [#allocation4], 0
    // Predicated region
    $region2: #{forward.1} parent=1 // pred_check
      _
    $region3: #{forward.1} parent=1 // pred_check_branch
      %15 = sbr.rel (0) target = $region5
    $region4: #{forward.1} parent=1 // pred_region
      _
    $region5: #{forward.1} parent=1 // pred_fallthru
      _
    // Predicated region
    $region6: #{forward.1} parent=1 // pred_check
      _
    $region7: #{forward.1} parent=1 // pred_check_branch
      %17 = sbr.rel (0) target = $region9
    $region8: #{forward.1} parent=1 // pred_region
      _
    $region9: #{forward.1} parent=1 // pred_fallthru
      _
    // Predicated region
    $region10: #{forward.1} parent=1 // pred_check
      _
    $region11: #{forward.1} parent=1 // pred_check_branch
      %19 = sbr.rel (0) target = $region13
    $region12: #{forward.1} parent=1 // pred_region
      _
    $region13: #{forward.1} parent=1 // pred_fallthru
      _
    // Predicated region
    $region14: #{forward.1} parent=1 // pred_check
      _
    $region15: #{forward.1} parent=1 // pred_check_branch
      %21 = sbr.rel (0) target = $region17
    $region16: #{forward.1} parent=1 // pred_region
      _
    $region17: #{forward.1} parent=1 // pred_fallthru
      _
    // Predicated region
    $region18: #{forward.1} parent=1 // pred_check
      _
    $region19: #{forward.1} parent=1 // pred_check_branch
      %23 = sbr.rel (0) target = $region21
    $region20: #{forward.1} parent=1 // pred_region
      _
    $region21: #{forward.1} parent=1 // pred_fallthru
      _
    // Predicated region
    $region22: #{forward.1} parent=1 // pred_check
      _
    $region23: #{forward.1} parent=1 // pred_check_branch
      %25 = sbr.rel (0) target = $region25
    $region24: #{forward.1} parent=1 // pred_region
      _
    $region25: #{forward.1} parent=1 // pred_fallthru
      _
    // Predicated region
    $region26: #{forward.1} parent=1 // pred_check
      _
    $region27: #{forward.1} parent=1 // pred_check_branch
      %27 = sbr.rel (0) target = $region29
    $region28: #{forward.1} parent=1 // pred_region
      _
    $region29: #{forward.1} parent=1 // pred_fallthru
      _
    // Predicated region
    $region30: #{forward.1} parent=1 // pred_check
      _
    $region31: #{forward.1} parent=1 // pred_check_branch
      %29 = sbr.rel (0) target = $region33
    $region32: #{forward.1} parent=1 // pred_region
      _
    $region33: #{forward.1} parent=1 // pred_fallthru
      _
    %v30 = vld [vmem:[%s0] sm:$0xff]
    %v31 = vlaneseq
    %v32 = vand.u32 %v31, 127
    %v33 = vlaneseq
    %v34 = vshrl.u32 %v33, 7
    %v35 = vsub.s32 0, %v34
    %v36 = vrot.slane %v30, %v35
    %38 = vbcast.lane.b32.xlu0 %v36, 256
    %v39 = vpop.permute.xlu0 %38
    %v40 = vlaneseq
    %v41 = vshrl.u32 %v40, 7
    %v42 = vsub.s32 1, %v41
    %v43 = vrot.slane %v30, %v42
    %45 = vbcast.lane.b32.xlu0 %v43, 256
    %v46 = vpop.permute.xlu0 %45
    %v47 = vlaneseq
    %v48 = vshrl.u32 %v47, 7
    %v49 = vsub.s32 2, %v48
    %v50 = vrot.slane %v30, %v49
    %52 = vbcast.lane.b32.xlu0 %v50, 256
    %v53 = vpop.permute.xlu0 %52
    %v54 = vlaneseq
    %v55 = vshrl.u32 %v54, 7
    %v56 = vsub.s32 3, %v55
    %v57 = vrot.slane %v30, %v56
    %59 = vbcast.lane.b32.xlu0 %v57, 256
    %v60 = vpop.permute.xlu0 %59
    %v61 = vlaneseq
    %v62 = vshrl.u32 %v61, 7
    %v63 = vsub.s32 4, %v62
    %v64 = vrot.slane %v30, %v63
    %66 = vbcast.lane.b32.xlu0 %v64, 256
    %v67 = vpop.permute.xlu0 %66
    %v68 = vlaneseq
    %v69 = vshrl.u32 %v68, 7
    %v70 = vsub.s32 5, %v69
    %v71 = vrot.slane %v30, %v70
    %73 = vbcast.lane.b32.xlu0 %v71, 256
    %v74 = vpop.permute.xlu0 %73
    %v75 = vlaneseq
    %v76 = vshrl.u32 %v75, 7
    %v77 = vsub.s32 6, %v76
    %v78 = vrot.slane %v30, %v77
    %80 = vbcast.lane.b32.xlu0 %v78, 256
    %v81 = vpop.permute.xlu0 %80
    %v82 = vlaneseq
    %v83 = vshrl.u32 %v82, 7
    %v84 = vsub.s32 7, %v83
    %v85 = vrot.slane %v30, %v84
    %87 = vbcast.lane.b32.xlu0 %v85, 256
    %v88 = vpop.permute.xlu0 %87
    %vm89 = vcmp.eq.s32.totalorder %v39, %v32
    %vm90 = vcmp.eq.s32.totalorder %v46, %v32
    %vm91 = vcmp.eq.s32.totalorder %v53, %v32
    %vm92 = vcmp.eq.s32.totalorder %v60, %v32
    %vm93 = vcmp.eq.s32.totalorder %v67, %v32
    %vm94 = vcmp.eq.s32.totalorder %v74, %v32
    %vm95 = vcmp.eq.s32.totalorder %v81, %v32
    %vm96 = vcmp.eq.s32.totalorder %v88, %v32
    %v97 = vsel %vm89, 1, 0
    %v98 = vsel %vm90, 1, 0
    %v99 = vsel %vm91, 1, 0
    %v100 = vsel %vm92, 1, 0
    %v101 = vsel %vm93, 1, 0
    %v102 = vsel %vm94, 1, 0
    %v103 = vsel %vm95, 1, 0
    %v104 = vsel %vm96, 1, 0
    %v105 = vcvt.s32.f32 %v97
    %v106 = vcvt.s32.f32 %v98
    %v107 = vcvt.s32.f32 %v99
    %v108 = vcvt.s32.f32 %v100
    %v109 = vcvt.s32.f32 %v101
    %v110 = vcvt.s32.f32 %v102
    %v111 = vcvt.s32.f32 %v103
    %v112 = vcvt.s32.f32 %v104
    %v113 = vld [vmem:[%s1] sm:$0xff]
    %v114 = vld [vmem:[%s1 + $0x8] sm:$0xff]
    %v115 = vld [vmem:[%s1 + $0x10] sm:$0xff]
    %v116 = vld [vmem:[%s1 + $0x18] sm:$0xff]
    %v117 = vld [vmem:[%s1 + $0x20] sm:$0xff]
    %v118 = vld [vmem:[%s1 + $0x28] sm:$0xff]
    %v119 = vld [vmem:[%s1 + $0x30] sm:$0xff]
    %v120 = vld [vmem:[%s1 + $0x38] sm:$0xff]
    %v121 = vld [vmem:[%s1 + $0x40] sm:$0xff]
    %v122 = vld [vmem:[%s1 + $0x48] sm:$0xff]
    %v123 = vld [vmem:[%s1 + $0x50] sm:$0xff]
    %v124 = vld [vmem:[%s1 + $0x58] sm:$0xff]
    %v125 = vld [vmem:[%s1 + $0x60] sm:$0xff]
    %v126 = vld [vmem:[%s1 + $0x68] sm:$0xff]
    %v127 = vld [vmem:[%s1 + $0x70] sm:$0xff]
    %v128 = vld [vmem:[%s1 + $0x78] sm:$0xff]
    %v137 = vcombine.low %v105, %v106
    %v138 = vcombine.low %v107, %v108
    %v140 = vunpack.c.l.s4 1983009808
    %v141 = vunpack.c.0.s8 %v140
    %v142 = vlaneseq
    %v143 = vshrl.u32 %v142, 7
    %v144 = vsub.s32 %v141, %v143
    %v145 = vrot.slane %v137, %v144
    %v147 = vunpack.c.l.s4 1983009808
    %v148 = vunpack.c.0.s8 %v147
    %v149 = vlaneseq
    %v150 = vshrl.u32 %v149, 7
    %v151 = vsub.s32 %v148, %v150
    %v152 = vrot.slane %v138, %v151
    %v153 = vcombine.low %v145, %v152
    %v154 = vcombine.low %v109, %v110
    %v155 = vcombine.low %v111, %v112
    %v157 = vunpack.c.l.s4 1983009808
    %v158 = vunpack.c.0.s8 %v157
    %v159 = vlaneseq
    %v160 = vshrl.u32 %v159, 7
    %v161 = vsub.s32 %v158, %v160
    %v162 = vrot.slane %v154, %v161
    %v164 = vunpack.c.l.s4 1983009808
    %v165 = vunpack.c.0.s8 %v164
    %v166 = vlaneseq
    %v167 = vshrl.u32 %v166, 7
    %v168 = vsub.s32 %v165, %v167
    %v169 = vrot.slane %v155, %v168
    %v170 = vcombine.low %v162, %v169
    %173 = vmatprep.subr.mxu0 0.0
    %174 = vmatpush1.msra.mxu0 %v113
    %175 = vmatprep.subr.mxu0 0.0
    %176 = vmatpush1.msra.mxu0 %v114
    %177 = vmatprep.subr.mxu0 0.0
    %178 = vmatpush1.msra.mxu0 %v115
    %179 = vmatprep.subr.mxu0 0.0
    %180 = vmatpush1.msra.mxu0 %v116
    %181 = vmatprep.subr.mxu0 0.0
    %182 = vmatpush1.msra.mxu0 %v117
    %183 = vmatprep.subr.mxu0 0.0
    %184 = vmatpush1.msra.mxu0 %v118
    %185 = vmatprep.subr.mxu0 0.0
    %186 = vmatpush1.msra.mxu0 %v119
    %187 = vmatprep.subr.mxu0 0.0
    %188 = vmatpush1.msra.mxu0 %v120
    %189 = vmatprep.subr.mxu0 0.0
    %190 = vmatpush1.msra.mxu0 %v121
    %191 = vmatprep.subr.mxu0 0.0
    %192 = vmatpush1.msra.mxu0 %v122
    %193 = vmatprep.subr.mxu0 0.0
    %194 = vmatpush1.msra.mxu0 %v123
    %195 = vmatprep.subr.mxu0 0.0
    %196 = vmatpush1.msra.mxu0 %v124
    %197 = vmatprep.subr.mxu0 0.0
    %198 = vmatpush1.msra.mxu0 %v125
    %199 = vmatprep.subr.mxu0 0.0
    %200 = vmatpush1.msra.mxu0 %v126
    %201 = vmatprep.subr.mxu0 0.0
    %202 = vmatpush1.msra.mxu0 %v127
    %203 = vmatprep.subr.mxu0 0.0
    %204 = vmatpush1.msra.mxu0 %v128
    %205 = vmatprep.subr.mxu0 0.0
    %206 = vmatpush1.msra.mxu0 0.0
    %207 = vmatprep.subr.mxu0 0.0
    %208 = vmatpush1.msra.mxu0 0.0
    %209 = vmatprep.subr.mxu0 0.0
    %210 = vmatpush1.msra.mxu0 0.0
    %211 = vmatprep.subr.mxu0 0.0
    %212 = vmatpush1.msra.mxu0 0.0
    %213 = vmatprep.subr.mxu0 0.0
    %214 = vmatpush1.msra.mxu0 0.0
    %215 = vmatprep.subr.mxu0 0.0
    %216 = vmatpush1.msra.mxu0 0.0
    %217 = vmatprep.subr.mxu0 0.0
    %218 = vmatpush1.msra.mxu0 0.0
    %219 = vmatprep.subr.mxu0 0.0
    %220 = vmatpush1.msra.mxu0 0.0
    %221 = vmatprep.subr.mxu0 0.0
    %222 = vmatpush1.msra.mxu0 0.0
    %223 = vmatprep.subr.mxu0 0.0
    %224 = vmatpush1.msra.mxu0 0.0
    %225 = vmatprep.subr.mxu0 0.0
    %226 = vmatpush1.msra.mxu0 0.0
    %227 = vmatprep.subr.mxu0 0.0
    %228 = vmatpush1.msra.mxu0 0.0
    %229 = vmatprep.subr.mxu0 0.0
    %230 = vmatpush1.msra.mxu0 0.0
    %231 = vmatprep.subr.mxu0 0.0
    %232 = vmatpush1.msra.mxu0 0.0
    %233 = vmatprep.subr.mxu0 0.0
    %234 = vmatpush1.msra.mxu0 0.0
    %235 = vmatprep.subr.mxu0 0.0
    %236 = vmatpush1.msra.mxu0 0.0
    %237 = vmatprep.mubr.f32.mxu0 0.0
    %238 = vmatmul.mubr.f32.gmra.mrb[0].mxu0 %v153
    %v239 = vpop.f32.mrb[0].mxu0
    %v240 = vadd.f32 0.0, %v239
    %v241 = vpop.f32.mrb[0].mxu0
    %242 = vmatprep.mubr.f32.mxu0 0.0
    %243 = vmatmul.mubr.f32.gmra.mrb[0].mxu0 %v170
    %v244 = vpop.f32.mrb[0].mxu0
    %v245 = vadd.f32 0.0, %v244
    %v246 = vpop.f32.mrb[0].mxu0
    %247 = vdwg.mxu0
    %v250 = vcombine.high %v240, %v240
    %v252 = vunpack.c.l.s4 1983009808
    %v253 = vunpack.c.0.s8 %v252
    %v254 = vlaneseq
    %v255 = vshrl.u32 %v254, 7
    %v256 = vsub.s32 %v253, %v255
    %v257 = vrot.slane %v240, %v256
    %v259 = vunpack.c.l.s4 1983009808
    %v260 = vunpack.c.0.s8 %v259
    %v261 = vlaneseq
    %v262 = vshrl.u32 %v261, 7
    %v263 = vsub.s32 %v260, %v262
    %v264 = vrot.slane %v250, %v263
    %v265 = vcombine.high %v257, %v257
    %v266 = vcombine.high %v264, %v264
    %v267 = vcombine.high %v245, %v245
    %v269 = vunpack.c.l.s4 1983009808
    %v270 = vunpack.c.0.s8 %v269
    %v271 = vlaneseq
    %v272 = vshrl.u32 %v271, 7
    %v273 = vsub.s32 %v270, %v272
    %v274 = vrot.slane %v245, %v273
    %v276 = vunpack.c.l.s4 1983009808
    %v277 = vunpack.c.0.s8 %v276
    %v278 = vlaneseq
    %v279 = vshrl.u32 %v278, 7
    %v280 = vsub.s32 %v277, %v279
    %v281 = vrot.slane %v267, %v280
    %v282 = vcombine.high %v274, %v274
    %v283 = vcombine.high %v281, %v281
    %s292 = scalar_lea.vmem [#allocation2], 16
    %vm293 = vcmask 254976
    %294 = vst.msk [vmem:[%s292] sm:$0x3] %vm293, 0.0
    %s295 = scalar_lea.vmem [#allocation2], 18
    %296 = vst.msk [vmem:[%s295] sm:$0x3] %vm293, 0.0
    %v297 = vld [vmem:[%s2] sm:$0xff]
    %v298 = vld [vmem:[%s2 + $0x8] sm:$0xff]
    %v299 = vld [vmem:[%s2 + $0x10] sm:$0xff]
    %v300 = vld [vmem:[%s2 + $0x18] sm:$0xff]
    %vm301 = vcmask 261120
    %v303 = vsel %vm301, 0.0, 0
    %305 = vmatprep.subr.mxu0 0.0
    %306 = vmatpush1.msra.mxu0 %v297
    %307 = vmatprep.subr.mxu0 0.0
    %308 = vmatpush1.msra.mxu0 %v298
    %309 = vmatprep.subr.mxu0 0.0
    %310 = vmatpush1.msra.mxu0 %v299
    %311 = vmatprep.subr.mxu0 0.0
    %312 = vmatpush1.msra.mxu0 %v300
    %313 = vmatprep.subr.mxu0 0.0
    %314 = vmatpush1.msra.mxu0 0.0
    %315 = vmatprep.subr.mxu0 0.0
    %316 = vmatpush1.msra.mxu0 0.0
    %317 = vmatprep.subr.mxu0 0.0
    %318 = vmatpush1.msra.mxu0 0.0
    %319 = vmatprep.subr.mxu0 0.0
    %320 = vmatpush1.msra.mxu0 0.0
    %321 = vmatprep.subr.mxu0 0.0
    %322 = vmatpush1.msra.mxu0 0.0
    %323 = vmatprep.subr.mxu0 0.0
    %324 = vmatpush1.msra.mxu0 0.0
    %325 = vmatprep.subr.mxu0 0.0
    %326 = vmatpush1.msra.mxu0 0.0
    %327 = vmatprep.subr.mxu0 0.0
    %328 = vmatpush1.msra.mxu0 0.0
    %329 = vmatprep.subr.mxu0 0.0
    %330 = vmatpush1.msra.mxu0 0.0
    %331 = vmatprep.subr.mxu0 0.0
    %332 = vmatpush1.msra.mxu0 0.0
    %333 = vmatprep.subr.mxu0 0.0
    %334 = vmatpush1.msra.mxu0 0.0
    %335 = vmatprep.subr.mxu0 0.0
    %336 = vmatpush1.msra.mxu0 0.0
    %337 = vmatprep.subr.mxu0 0.0
    %338 = vmatpush1.msra.mxu0 0.0
    %339 = vmatprep.subr.mxu0 0.0
    %340 = vmatpush1.msra.mxu0 0.0
    %341 = vmatprep.subr.mxu0 0.0
    %342 = vmatpush1.msra.mxu0 0.0
    %343 = vmatprep.subr.mxu0 0.0
    %344 = vmatpush1.msra.mxu0 0.0
    %345 = vmatprep.subr.mxu0 0.0
    %346 = vmatpush1.msra.mxu0 0.0
    %347 = vmatprep.subr.mxu0 0.0
    %348 = vmatpush1.msra.mxu0 0.0
    %349 = vmatprep.subr.mxu0 0.0
    %350 = vmatpush1.msra.mxu0 0.0
    %351 = vmatprep.subr.mxu0 0.0
    %352 = vmatpush1.msra.mxu0 0.0
    %353 = vmatprep.subr.mxu0 0.0
    %354 = vmatpush1.msra.mxu0 0.0
    %355 = vmatprep.subr.mxu0 0.0
    %356 = vmatpush1.msra.mxu0 0.0
    %357 = vmatprep.subr.mxu0 0.0
    %358 = vmatpush1.msra.mxu0 0.0
    %359 = vmatprep.subr.mxu0 0.0
    %360 = vmatpush1.msra.mxu0 0.0
    %361 = vmatprep.subr.mxu0 0.0
    %362 = vmatpush1.msra.mxu0 0.0
    %363 = vmatprep.subr.mxu0 0.0
    %364 = vmatpush1.msra.mxu0 0.0
    %365 = vmatprep.subr.mxu0 0.0
    %366 = vmatpush1.msra.mxu0 0.0
    %367 = vmatprep.subr.mxu0 0.0
    %368 = vmatpush1.msra.mxu0 0.0
    %369 = vmatprep.mubr.f32.mxu0 0.0
    %370 = vmatmul.mubr.f32.gmra.mrb[0].mxu0 %v303
    %v371 = vpop.f32.mrb[0].mxu0
    %v372 = vadd.f32 0.0, %v371
    %v373 = vpop.f32.mrb[0].mxu0
    %374 = vdwg.mxu0
    %v375 = vadd.f32 %v257, %v372
    %v376 = vtanh.pop %v375
    %377 = vst.msk [vmem:[#allocation2] sm:$0x3] %vm293, %v376
    %v379 = vsel %vm301, %v376, 0
    %381 = vmatprep.subr.mxu0 0.0
    %382 = vmatpush1.msra.mxu0 %v297
    %383 = vmatprep.subr.mxu0 0.0
    %384 = vmatpush1.msra.mxu0 %v298
    %385 = vmatprep.subr.mxu0 0.0
    %386 = vmatpush1.msra.mxu0 %v299
    %387 = vmatprep.subr.mxu0 0.0
    %388 = vmatpush1.msra.mxu0 %v300
    %389 = vmatprep.subr.mxu0 0.0
    %390 = vmatpush1.msra.mxu0 0.0
    %391 = vmatprep.subr.mxu0 0.0
    %392 = vmatpush1.msra.mxu0 0.0
    %393 = vmatprep.subr.mxu0 0.0
    %394 = vmatpush1.msra.mxu0 0.0
    %395 = vmatprep.subr.mxu0 0.0
    %396 = vmatpush1.msra.mxu0 0.0
    %397 = vmatprep.subr.mxu0 0.0
    %398 = vmatpush1.msra.mxu0 0.0
    %399 = vmatprep.subr.mxu0 0.0
    %400 = vmatpush1.msra.mxu0 0.0
    %401 = vmatprep.subr.mxu0 0.0
    %402 = vmatpush1.msra.mxu0 0.0
    %403 = vmatprep.subr.mxu0 0.0
    %404 = vmatpush1.msra.mxu0 0.0
    %405 = vmatprep.subr.mxu0 0.0
    %406 = vmatpush1.msra.mxu0 0.0
    %407 = vmatprep.subr.mxu0 0.0
    %408 = vmatpush1.msra.mxu0 0.0
    %409 = vmatprep.subr.mxu0 0.0
    %410 = vmatpush1.msra.mxu0 0.0
    %411 = vmatprep.subr.mxu0 0.0
    %412 = vmatpush1.msra.mxu0 0.0
    %413 = vmatprep.subr.mxu0 0.0
    %414 = vmatpush1.msra.mxu0 0.0
    %415 = vmatprep.subr.mxu0 0.0
    %416 = vmatpush1.msra.mxu0 0.0
    %417 = vmatprep.subr.mxu0 0.0
    %418 = vmatpush1.msra.mxu0 0.0
    %419 = vmatprep.subr.mxu0 0.0
    %420 = vmatpush1.msra.mxu0 0.0
    %421 = vmatprep.subr.mxu0 0.0
    %422 = vmatpush1.msra.mxu0 0.0
    %423 = vmatprep.subr.mxu0 0.0
    %424 = vmatpush1.msra.mxu0 0.0
    %425 = vmatprep.subr.mxu0 0.0
    %426 = vmatpush1.msra.mxu0 0.0
    %427 = vmatprep.subr.mxu0 0.0
    %428 = vmatpush1.msra.mxu0 0.0
    %429 = vmatprep.subr.mxu0 0.0
    %430 = vmatpush1.msra.mxu0 0.0
    %431 = vmatprep.subr.mxu0 0.0
    %432 = vmatpush1.msra.mxu0 0.0
    %433 = vmatprep.subr.mxu0 0.0
    %434 = vmatpush1.msra.mxu0 0.0
    %435 = vmatprep.subr.mxu0 0.0
    %436 = vmatpush1.msra.mxu0 0.0
    %437 = vmatprep.subr.mxu0 0.0
    %438 = vmatpush1.msra.mxu0 0.0
    %439 = vmatprep.subr.mxu0 0.0
    %440 = vmatpush1.msra.mxu0 0.0
    %441 = vmatprep.subr.mxu0 0.0
    %442 = vmatpush1.msra.mxu0 0.0
    %443 = vmatprep.subr.mxu0 0.0
    %444 = vmatpush1.msra.mxu0 0.0
    %445 = vmatprep.mubr.f32.mxu0 0.0
    %446 = vmatmul.mubr.f32.gmra.mrb[0].mxu0 %v379
    %v447 = vpop.f32.mrb[0].mxu0
    %v448 = vadd.f32 0.0, %v447
    %v449 = vpop.f32.mrb[0].mxu0
    %450 = vdwg.mxu0
    %v451 = vadd.f32 %v265, %v448
    %v452 = vtanh.pop %v451
    %s453 = scalar_lea.vmem [#allocation2], 2
    %454 = vst.msk [vmem:[%s453] sm:$0x3] %vm293, %v452
    %v456 = vsel %vm301, %v452, 0
    %458 = vmatprep.subr.mxu0 0.0
    %459 = vmatpush1.msra.mxu0 %v297
    %460 = vmatprep.subr.mxu0 0.0
    %461 = vmatpush1.msra.mxu0 %v298
    %462 = vmatprep.subr.mxu0 0.0
    %463 = vmatpush1.msra.mxu0 %v299
    %464 = vmatprep.subr.mxu0 0.0
    %465 = vmatpush1.msra.mxu0 %v300
    %466 = vmatprep.subr.mxu0 0.0
    %467 = vmatpush1.msra.mxu0 0.0
    %468 = vmatprep.subr.mxu0 0.0
    %469 = vmatpush1.msra.mxu0 0.0
    %470 = vmatprep.subr.mxu0 0.0
    %471 = vmatpush1.msra.mxu0 0.0
    %472 = vmatprep.subr.mxu0 0.0
    %473 = vmatpush1.msra.mxu0 0.0
    %474 = vmatprep.subr.mxu0 0.0
    %475 = vmatpush1.msra.mxu0 0.0
    %476 = vmatprep.subr.mxu0 0.0
    %477 = vmatpush1.msra.mxu0 0.0
    %478 = vmatprep.subr.mxu0 0.0
    %479 = vmatpush1.msra.mxu0 0.0
    %480 = vmatprep.subr.mxu0 0.0
    %481 = vmatpush1.msra.mxu0 0.0
    %482 = vmatprep.subr.mxu0 0.0
    %483 = vmatpush1.msra.mxu0 0.0
    %484 = vmatprep.subr.mxu0 0.0
    %485 = vmatpush1.msra.mxu0 0.0
    %486 = vmatprep.subr.mxu0 0.0
    %487 = vmatpush1.msra.mxu0 0.0
    %488 = vmatprep.subr.mxu0 0.0
    %489 = vmatpush1.msra.mxu0 0.0
    %490 = vmatprep.subr.mxu0 0.0
    %491 = vmatpush1.msra.mxu0 0.0
    %492 = vmatprep.subr.mxu0 0.0
    %493 = vmatpush1.msra.mxu0 0.0
    %494 = vmatprep.subr.mxu0 0.0
    %495 = vmatpush1.msra.mxu0 0.0
    %496 = vmatprep.subr.mxu0 0.0
    %497 = vmatpush1.msra.mxu0 0.0
    %498 = vmatprep.subr.mxu0 0.0
    %499 = vmatpush1.msra.mxu0 0.0
    %500 = vmatprep.subr.mxu0 0.0
    %501 = vmatpush1.msra.mxu0 0.0
    %502 = vmatprep.subr.mxu0 0.0
    %503 = vmatpush1.msra.mxu0 0.0
    %504 = vmatprep.subr.mxu0 0.0
    %505 = vmatpush1.msra.mxu0 0.0
    %506 = vmatprep.subr.mxu0 0.0
    %507 = vmatpush1.msra.mxu0 0.0
    %508 = vmatprep.subr.mxu0 0.0
    %509 = vmatpush1.msra.mxu0 0.0
    %510 = vmatprep.subr.mxu0 0.0
    %511 = vmatpush1.msra.mxu0 0.0
    %512 = vmatprep.subr.mxu0 0.0
    %513 = vmatpush1.msra.mxu0 0.0
    %514 = vmatprep.subr.mxu0 0.0
    %515 = vmatpush1.msra.mxu0 0.0
    %516 = vmatprep.subr.mxu0 0.0
    %517 = vmatpush1.msra.mxu0 0.0
    %518 = vmatprep.subr.mxu0 0.0
    %519 = vmatpush1.msra.mxu0 0.0
    %520 = vmatprep.subr.mxu0 0.0
    %521 = vmatpush1.msra.mxu0 0.0
    %522 = vmatprep.mubr.f32.mxu0 0.0
    %523 = vmatmul.mubr.f32.gmra.mrb[0].mxu0 %v456
    %v524 = vpop.f32.mrb[0].mxu0
    %v525 = vadd.f32 0.0, %v524
    %v526 = vpop.f32.mrb[0].mxu0
    %527 = vdwg.mxu0
    %v528 = vadd.f32 %v264, %v525
    %v529 = vtanh.pop %v528
    %s530 = scalar_lea.vmem [#allocation2], 4
    %531 = vst.msk [vmem:[%s530] sm:$0x3] %vm293, %v529
    %v533 = vsel %vm301, %v529, 0
    %535 = vmatprep.subr.mxu0 0.0
    %536 = vmatpush1.msra.mxu0 %v297
    %537 = vmatprep.subr.mxu0 0.0
    %538 = vmatpush1.msra.mxu0 %v298
    %539 = vmatprep.subr.mxu0 0.0
    %540 = vmatpush1.msra.mxu0 %v299
    %541 = vmatprep.subr.mxu0 0.0
    %542 = vmatpush1.msra.mxu0 %v300
    %543 = vmatprep.subr.mxu0 0.0
    %544 = vmatpush1.msra.mxu0 0.0
    %545 = vmatprep.subr.mxu0 0.0
    %546 = vmatpush1.msra.mxu0 0.0
    %547 = vmatprep.subr.mxu0 0.0
    %548 = vmatpush1.msra.mxu0 0.0
    %549 = vmatprep.subr.mxu0 0.0
    %550 = vmatpush1.msra.mxu0 0.0
    %551 = vmatprep.subr.mxu0 0.0
    %552 = vmatpush1.msra.mxu0 0.0
    %553 = vmatprep.subr.mxu0 0.0
    %554 = vmatpush1.msra.mxu0 0.0
    %555 = vmatprep.subr.mxu0 0.0
    %556 = vmatpush1.msra.mxu0 0.0
    %557 = vmatprep.subr.mxu0 0.0
    %558 = vmatpush1.msra.mxu0 0.0
    %559 = vmatprep.subr.mxu0 0.0
    %560 = vmatpush1.msra.mxu0 0.0
    %561 = vmatprep.subr.mxu0 0.0
    %562 = vmatpush1.msra.mxu0 0.0
    %563 = vmatprep.subr.mxu0 0.0
    %564 = vmatpush1.msra.mxu0 0.0
    %565 = vmatprep.subr.mxu0 0.0
    %566 = vmatpush1.msra.mxu0 0.0
    %567 = vmatprep.subr.mxu0 0.0
    %568 = vmatpush1.msra.mxu0 0.0
    %569 = vmatprep.subr.mxu0 0.0
    %570 = vmatpush1.msra.mxu0 0.0
    %571 = vmatprep.subr.mxu0 0.0
    %572 = vmatpush1.msra.mxu0 0.0
    %573 = vmatprep.subr.mxu0 0.0
    %574 = vmatpush1.msra.mxu0 0.0
    %575 = vmatprep.subr.mxu0 0.0
    %576 = vmatpush1.msra.mxu0 0.0
    %577 = vmatprep.subr.mxu0 0.0
    %578 = vmatpush1.msra.mxu0 0.0
    %579 = vmatprep.subr.mxu0 0.0
    %580 = vmatpush1.msra.mxu0 0.0
    %581 = vmatprep.subr.mxu0 0.0
    %582 = vmatpush1.msra.mxu0 0.0
    %583 = vmatprep.subr.mxu0 0.0
    %584 = vmatpush1.msra.mxu0 0.0
    %585 = vmatprep.subr.mxu0 0.0
    %586 = vmatpush1.msra.mxu0 0.0
    %587 = vmatprep.subr.mxu0 0.0
    %588 = vmatpush1.msra.mxu0 0.0
    %589 = vmatprep.subr.mxu0 0.0
    %590 = vmatpush1.msra.mxu0 0.0
    %591 = vmatprep.subr.mxu0 0.0
    %592 = vmatpush1.msra.mxu0 0.0
    %593 = vmatprep.subr.mxu0 0.0
    %594 = vmatpush1.msra.mxu0 0.0
    %595 = vmatprep.subr.mxu0 0.0
    %596 = vmatpush1.msra.mxu0 0.0
    %597 = vmatprep.subr.mxu0 0.0
    %598 = vmatpush1.msra.mxu0 0.0
    %599 = vmatprep.mubr.f32.mxu0 0.0
    %600 = vmatmul.mubr.f32.gmra.mrb[0].mxu0 %v533
    %v601 = vpop.f32.mrb[0].mxu0
    %v602 = vadd.f32 0.0, %v601
    %v603 = vpop.f32.mrb[0].mxu0
    %604 = vdwg.mxu0
    %v605 = vadd.f32 %v266, %v602
    %v606 = vtanh.pop %v605
    %s607 = scalar_lea.vmem [#allocation2], 6
    %608 = vst.msk [vmem:[%s607] sm:$0x3] %vm293, %v606
    %v610 = vsel %vm301, %v606, 0
    %612 = vmatprep.subr.mxu0 0.0
    %613 = vmatpush1.msra.mxu0 %v297
    %614 = vmatprep.subr.mxu0 0.0
    %615 = vmatpush1.msra.mxu0 %v298
    %616 = vmatprep.subr.mxu0 0.0
    %617 = vmatpush1.msra.mxu0 %v299
    %618 = vmatprep.subr.mxu0 0.0
    %619 = vmatpush1.msra.mxu0 %v300
    %620 = vmatprep.subr.mxu0 0.0
    %621 = vmatpush1.msra.mxu0 0.0
    %622 = vmatprep.subr.mxu0 0.0
    %623 = vmatpush1.msra.mxu0 0.0
    %624 = vmatprep.subr.mxu0 0.0
    %625 = vmatpush1.msra.mxu0 0.0
    %626 = vmatprep.subr.mxu0 0.0
    %627 = vmatpush1.msra.mxu0 0.0
    %628 = vmatprep.subr.mxu0 0.0
    %629 = vmatpush1.msra.mxu0 0.0
    %630 = vmatprep.subr.mxu0 0.0
    %631 = vmatpush1.msra.mxu0 0.0
    %632 = vmatprep.subr.mxu0 0.0
    %633 = vmatpush1.msra.mxu0 0.0
    %634 = vmatprep.subr.mxu0 0.0
    %635 = vmatpush1.msra.mxu0 0.0
    %636 = vmatprep.subr.mxu0 0.0
    %637 = vmatpush1.msra.mxu0 0.0
    %638 = vmatprep.subr.mxu0 0.0
    %639 = vmatpush1.msra.mxu0 0.0
    %640 = vmatprep.subr.mxu0 0.0
    %641 = vmatpush1.msra.mxu0 0.0
    %642 = vmatprep.subr.mxu0 0.0
    %643 = vmatpush1.msra.mxu0 0.0
    %644 = vmatprep.subr.mxu0 0.0
    %645 = vmatpush1.msra.mxu0 0.0
    %646 = vmatprep.subr.mxu0 0.0
    %647 = vmatpush1.msra.mxu0 0.0
    %648 = vmatprep.subr.mxu0 0.0
    %649 = vmatpush1.msra.mxu0 0.0
    %650 = vmatprep.subr.mxu0 0.0
    %651 = vmatpush1.msra.mxu0 0.0
    %652 = vmatprep.subr.mxu0 0.0
    %653 = vmatpush1.msra.mxu0 0.0
    %654 = vmatprep.subr.mxu0 0.0
    %655 = vmatpush1.msra.mxu0 0.0
    %656 = vmatprep.subr.mxu0 0.0
    %657 = vmatpush1.msra.mxu0 0.0
    %658 = vmatprep.subr.mxu0 0.0
    %659 = vmatpush1.msra.mxu0 0.0
    %660 = vmatprep.subr.mxu0 0.0
    %661 = vmatpush1.msra.mxu0 0.0
    %662 = vmatprep.subr.mxu0 0.0
    %663 = vmatpush1.msra.mxu0 0.0
    %664 = vmatprep.subr.mxu0 0.0
    %665 = vmatpush1.msra.mxu0 0.0
    %666 = vmatprep.subr.mxu0 0.0
    %667 = vmatpush1.msra.mxu0 0.0
    %668 = vmatprep.subr.mxu0 0.0
    %669 = vmatpush1.msra.mxu0 0.0
    %670 = vmatprep.subr.mxu0 0.0
    %671 = vmatpush1.msra.mxu0 0.0
    %672 = vmatprep.subr.mxu0 0.0
    %673 = vmatpush1.msra.mxu0 0.0
    %674 = vmatprep.subr.mxu0 0.0
    %675 = vmatpush1.msra.mxu0 0.0
    %676 = vmatprep.mubr.f32.mxu0 0.0
    %677 = vmatmul.mubr.f32.gmra.mrb[0].mxu0 %v610
    %v678 = vpop.f32.mrb[0].mxu0
    %v679 = vadd.f32 0.0, %v678
    %v680 = vpop.f32.mrb[0].mxu0
    %681 = vdwg.mxu0
    %v682 = vadd.f32 %v274, %v679
    %v683 = vtanh.pop %v682
    %s684 = scalar_lea.vmem [#allocation2], 8
    %685 = vst.msk [vmem:[%s684] sm:$0x3] %vm293, %v683
    %v687 = vsel %vm301, %v683, 0
    %689 = vmatprep.subr.mxu0 0.0
    %690 = vmatpush1.msra.mxu0 %v297
    %691 = vmatprep.subr.mxu0 0.0
    %692 = vmatpush1.msra.mxu0 %v298
    %693 = vmatprep.subr.mxu0 0.0
    %694 = vmatpush1.msra.mxu0 %v299
    %695 = vmatprep.subr.mxu0 0.0
    %696 = vmatpush1.msra.mxu0 %v300
    %697 = vmatprep.subr.mxu0 0.0
    %698 = vmatpush1.msra.mxu0 0.0
    %699 = vmatprep.subr.mxu0 0.0
    %700 = vmatpush1.msra.mxu0 0.0
    %701 = vmatprep.subr.mxu0 0.0
    %702 = vmatpush1.msra.mxu0 0.0
    %703 = vmatprep.subr.mxu0 0.0
    %704 = vmatpush1.msra.mxu0 0.0
    %705 = vmatprep.subr.mxu0 0.0
    %706 = vmatpush1.msra.mxu0 0.0
    %707 = vmatprep.subr.mxu0 0.0
    %708 = vmatpush1.msra.mxu0 0.0
    %709 = vmatprep.subr.mxu0 0.0
    %710 = vmatpush1.msra.mxu0 0.0
    %711 = vmatprep.subr.mxu0 0.0
    %712 = vmatpush1.msra.mxu0 0.0
    %713 = vmatprep.subr.mxu0 0.0
    %714 = vmatpush1.msra.mxu0 0.0
    %715 = vmatprep.subr.mxu0 0.0
    %716 = vmatpush1.msra.mxu0 0.0
    %717 = vmatprep.subr.mxu0 0.0
    %718 = vmatpush1.msra.mxu0 0.0
    %719 = vmatprep.subr.mxu0 0.0
    %720 = vmatpush1.msra.mxu0 0.0
    %721 = vmatprep.subr.mxu0 0.0
    %722 = vmatpush1.msra.mxu0 0.0
    %723 = vmatprep.subr.mxu0 0.0
    %724 = vmatpush1.msra.mxu0 0.0
    %725 = vmatprep.subr.mxu0 0.0
    %726 = vmatpush1.msra.mxu0 0.0
    %727 = vmatprep.subr.mxu0 0.0
    %728 = vmatpush1.msra.mxu0 0.0
    %729 = vmatprep.subr.mxu0 0.0
    %730 = vmatpush1.msra.mxu0 0.0
    %731 = vmatprep.subr.mxu0 0.0
    %732 = vmatpush1.msra.mxu0 0.0
    %733 = vmatprep.subr.mxu0 0.0
    %734 = vmatpush1.msra.mxu0 0.0
    %735 = vmatprep.subr.mxu0 0.0
    %736 = vmatpush1.msra.mxu0 0.0
    %737 = vmatprep.subr.mxu0 0.0
    %738 = vmatpush1.msra.mxu0 0.0
    %739 = vmatprep.subr.mxu0 0.0
    %740 = vmatpush1.msra.mxu0 0.0
    %741 = vmatprep.subr.mxu0 0.0
    %742 = vmatpush1.msra.mxu0 0.0
    %743 = vmatprep.subr.mxu0 0.0
    %744 = vmatpush1.msra.mxu0 0.0
    %745 = vmatprep.subr.mxu0 0.0
    %746 = vmatpush1.msra.mxu0 0.0
    %747 = vmatprep.subr.mxu0 0.0
    %748 = vmatpush1.msra.mxu0 0.0
    %749 = vmatprep.subr.mxu0 0.0
    %750 = vmatpush1.msra.mxu0 0.0
    %751 = vmatprep.subr.mxu0 0.0
    %752 = vmatpush1.msra.mxu0 0.0
    %753 = vmatprep.mubr.f32.mxu0 0.0
    %754 = vmatmul.mubr.f32.gmra.mrb[0].mxu0 %v687
    %v755 = vpop.f32.mrb[0].mxu0
    %v756 = vadd.f32 0.0, %v755
    %v757 = vpop.f32.mrb[0].mxu0
    %758 = vdwg.mxu0
    %v759 = vadd.f32 %v282, %v756
    %v760 = vtanh.pop %v759
    %s761 = scalar_lea.vmem [#allocation2], 10
    %762 = vst.msk [vmem:[%s761] sm:$0x3] %vm293, %v760
    %v764 = vsel %vm301, %v760, 0
    %766 = vmatprep.subr.mxu0 0.0
    %767 = vmatpush1.msra.mxu0 %v297
    %768 = vmatprep.subr.mxu0 0.0
    %769 = vmatpush1.msra.mxu0 %v298
    %770 = vmatprep.subr.mxu0 0.0
    %771 = vmatpush1.msra.mxu0 %v299
    %772 = vmatprep.subr.mxu0 0.0
    %773 = vmatpush1.msra.mxu0 %v300
    %774 = vmatprep.subr.mxu0 0.0
    %775 = vmatpush1.msra.mxu0 0.0
    %776 = vmatprep.subr.mxu0 0.0
    %777 = vmatpush1.msra.mxu0 0.0
    %778 = vmatprep.subr.mxu0 0.0
    %779 = vmatpush1.msra.mxu0 0.0
    %780 = vmatprep.subr.mxu0 0.0
    %781 = vmatpush1.msra.mxu0 0.0
    %782 = vmatprep.subr.mxu0 0.0
    %783 = vmatpush1.msra.mxu0 0.0
    %784 = vmatprep.subr.mxu0 0.0
    %785 = vmatpush1.msra.mxu0 0.0
    %786 = vmatprep.subr.mxu0 0.0
    %787 = vmatpush1.msra.mxu0 0.0
    %788 = vmatprep.subr.mxu0 0.0
    %789 = vmatpush1.msra.mxu0 0.0
    %790 = vmatprep.subr.mxu0 0.0
    %791 = vmatpush1.msra.mxu0 0.0
    %792 = vmatprep.subr.mxu0 0.0
    %793 = vmatpush1.msra.mxu0 0.0
    %794 = vmatprep.subr.mxu0 0.0
    %795 = vmatpush1.msra.mxu0 0.0
    %796 = vmatprep.subr.mxu0 0.0
    %797 = vmatpush1.msra.mxu0 0.0
    %798 = vmatprep.subr.mxu0 0.0
    %799 = vmatpush1.msra.mxu0 0.0
    %800 = vmatprep.subr.mxu0 0.0
    %801 = vmatpush1.msra.mxu0 0.0
    %802 = vmatprep.subr.mxu0 0.0
    %803 = vmatpush1.msra.mxu0 0.0
    %804 = vmatprep.subr.mxu0 0.0
    %805 = vmatpush1.msra.mxu0 0.0
    %806 = vmatprep.subr.mxu0 0.0
    %807 = vmatpush1.msra.mxu0 0.0
    %808 = vmatprep.subr.mxu0 0.0
    %809 = vmatpush1.msra.mxu0 0.0
    %810 = vmatprep.subr.mxu0 0.0
    %811 = vmatpush1.msra.mxu0 0.0
    %812 = vmatprep.subr.mxu0 0.0
    %813 = vmatpush1.msra.mxu0 0.0
    %814 = vmatprep.subr.mxu0 0.0
    %815 = vmatpush1.msra.mxu0 0.0
    %816 = vmatprep.subr.mxu0 0.0
    %817 = vmatpush1.msra.mxu0 0.0
    %818 = vmatprep.subr.mxu0 0.0
    %819 = vmatpush1.msra.mxu0 0.0
    %820 = vmatprep.subr.mxu0 0.0
    %821 = vmatpush1.msra.mxu0 0.0
    %822 = vmatprep.subr.mxu0 0.0
    %823 = vmatpush1.msra.mxu0 0.0
    %824 = vmatprep.subr.mxu0 0.0
    %825 = vmatpush1.msra.mxu0 0.0
    %826 = vmatprep.subr.mxu0 0.0
    %827 = vmatpush1.msra.mxu0 0.0
    %828 = vmatprep.subr.mxu0 0.0
    %829 = vmatpush1.msra.mxu0 0.0
    %830 = vmatprep.mubr.f32.mxu0 0.0
    %831 = vmatmul.mubr.f32.gmra.mrb[0].mxu0 %v764
    %v832 = vpop.f32.mrb[0].mxu0
    %v833 = vadd.f32 0.0, %v832
    %v834 = vpop.f32.mrb[0].mxu0
    %835 = vdwg.mxu0
    %v836 = vadd.f32 %v281, %v833
    %v837 = vtanh.pop %v836
    %s838 = scalar_lea.vmem [#allocation2], 12
    %839 = vst.msk [vmem:[%s838] sm:$0x3] %vm293, %v837
    %v841 = vsel %vm301, %v837, 0
    %843 = vmatprep.subr.mxu0 0.0
    %844 = vmatpush1.msra.mxu0 %v297
    %845 = vmatprep.subr.mxu0 0.0
    %846 = vmatpush1.msra.mxu0 %v298
    %847 = vmatprep.subr.mxu0 0.0
    %848 = vmatpush1.msra.mxu0 %v299
    %849 = vmatprep.subr.mxu0 0.0
    %850 = vmatpush1.msra.mxu0 %v300
    %851 = vmatprep.subr.mxu0 0.0
    %852 = vmatpush1.msra.mxu0 0.0
    %853 = vmatprep.subr.mxu0 0.0
    %854 = vmatpush1.msra.mxu0 0.0
    %855 = vmatprep.subr.mxu0 0.0
    %856 = vmatpush1.msra.mxu0 0.0
    %857 = vmatprep.subr.mxu0 0.0
    %858 = vmatpush1.msra.mxu0 0.0
    %859 = vmatprep.subr.mxu0 0.0
    %860 = vmatpush1.msra.mxu0 0.0
    %861 = vmatprep.subr.mxu0 0.0
    %862 = vmatpush1.msra.mxu0 0.0
    %863 = vmatprep.subr.mxu0 0.0
    %864 = vmatpush1.msra.mxu0 0.0
    %865 = vmatprep.subr.mxu0 0.0
    %866 = vmatpush1.msra.mxu0 0.0
    %867 = vmatprep.subr.mxu0 0.0
    %868 = vmatpush1.msra.mxu0 0.0
    %869 = vmatprep.subr.mxu0 0.0
    %870 = vmatpush1.msra.mxu0 0.0
    %871 = vmatprep.subr.mxu0 0.0
    %872 = vmatpush1.msra.mxu0 0.0
    %873 = vmatprep.subr.mxu0 0.0
    %874 = vmatpush1.msra.mxu0 0.0
    %875 = vmatprep.subr.mxu0 0.0
    %876 = vmatpush1.msra.mxu0 0.0
    %877 = vmatprep.subr.mxu0 0.0
    %878 = vmatpush1.msra.mxu0 0.0
    %879 = vmatprep.subr.mxu0 0.0
    %880 = vmatpush1.msra.mxu0 0.0
    %881 = vmatprep.subr.mxu0 0.0
    %882 = vmatpush1.msra.mxu0 0.0
    %883 = vmatprep.subr.mxu0 0.0
    %884 = vmatpush1.msra.mxu0 0.0
    %885 = vmatprep.subr.mxu0 0.0
    %886 = vmatpush1.msra.mxu0 0.0
    %887 = vmatprep.subr.mxu0 0.0
    %888 = vmatpush1.msra.mxu0 0.0
    %889 = vmatprep.subr.mxu0 0.0
    %890 = vmatpush1.msra.mxu0 0.0
    %891 = vmatprep.subr.mxu0 0.0
    %892 = vmatpush1.msra.mxu0 0.0
    %893 = vmatprep.subr.mxu0 0.0
    %894 = vmatpush1.msra.mxu0 0.0
    %895 = vmatprep.subr.mxu0 0.0
    %896 = vmatpush1.msra.mxu0 0.0
    %897 = vmatprep.subr.mxu0 0.0
    %898 = vmatpush1.msra.mxu0 0.0
    %899 = vmatprep.subr.mxu0 0.0
    %900 = vmatpush1.msra.mxu0 0.0
    %901 = vmatprep.subr.mxu0 0.0
    %902 = vmatpush1.msra.mxu0 0.0
    %903 = vmatprep.subr.mxu0 0.0
    %904 = vmatpush1.msra.mxu0 0.0
    %905 = vmatprep.subr.mxu0 0.0
    %906 = vmatpush1.msra.mxu0 0.0
    %907 = vmatprep.mubr.f32.mxu0 0.0
    %908 = vmatmul.mubr.f32.gmra.mrb[0].mxu0 %v841
    %v909 = vpop.f32.mrb[0].mxu0
    %v910 = vadd.f32 0.0, %v909
    %v911 = vpop.f32.mrb[0].mxu0
    %912 = vdwg.mxu0
    %v913 = vadd.f32 %v283, %v910
    %v914 = vtanh.pop %v913
    %s915 = scalar_lea.vmem [#allocation2], 14
    %916 = vst.msk [vmem:[%s915] sm:$0x3] %vm293, %v914
    %v917 = vld [vmem:[#allocation2] sm:$0x3]
    %v918 = vld [vmem:[#allocation2 + $0x2] sm:$0x3]
    %v919 = vld [vmem:[#allocation2 + $0x4] sm:$0x3]
    %v920 = vld [vmem:[#allocation2 + $0x6] sm:$0x3]
    %v921 = vld [vmem:[#allocation2 + $0x8] sm:$0x3]
    %v922 = vld [vmem:[#allocation2 + $0xa] sm:$0x3]
    %v923 = vld [vmem:[#allocation2 + $0xc] sm:$0x3]
    %v924 = vld [vmem:[#allocation2 + $0xe] sm:$0x3]
    %v925 = vld [vmem:[#allocation2 + $0x10] sm:$0x3]
    %v926 = vld [vmem:[#allocation2 + $0x12] sm:$0x3]
    %933 = vrot.lane.b32.xlu0 %v918, 32
    %v934 = vpop.permute.xlu0 %933
    %935 = vrot.lane.b32.xlu0 %v919, 32
    %v936 = vpop.permute.xlu0 %935
    %937 = vrot.lane.b32.xlu0 %v920, 32
    %v938 = vpop.permute.xlu0 %937
    %939 = vrot.lane.b32.xlu0 %v921, 32
    %v940 = vpop.permute.xlu0 %939
    %941 = vrot.lane.b32.xlu0 %v922, 32
    %v942 = vpop.permute.xlu0 %941
    %943 = vrot.lane.b32.xlu0 %v923, 32
    %v944 = vpop.permute.xlu0 %943
    %952 = vrot.lane.b32.xlu0 %v919, 64
    %v953 = vpop.permute.xlu0 %952
    %954 = vrot.lane.b32.xlu0 %v920, 64
    %v955 = vpop.permute.xlu0 %954
    %956 = vrot.lane.b32.xlu0 %v921, 64
    %v957 = vpop.permute.xlu0 %956
    %958 = vrot.lane.b32.xlu0 %v922, 64
    %v959 = vpop.permute.xlu0 %958
    %960 = vrot.lane.b32.xlu0 %v923, 64
    %v961 = vpop.permute.xlu0 %960
    %962 = vrot.lane.b32.xlu0 %v924, 64
    %v963 = vpop.permute.xlu0 %962
    %971 = vrot.lane.b32.xlu0 %v920, 96
    %v972 = vpop.permute.xlu0 %971
    %973 = vrot.lane.b32.xlu0 %v921, 96
    %v974 = vpop.permute.xlu0 %973
    %975 = vrot.lane.b32.xlu0 %v922, 96
    %v976 = vpop.permute.xlu0 %975
    %977 = vrot.lane.b32.xlu0 %v923, 96
    %v978 = vpop.permute.xlu0 %977
    %979 = vrot.lane.b32.xlu0 %v924, 96
    %v980 = vpop.permute.xlu0 %979
    %981 = vrot.lane.b32.xlu0 %v925, 96
    %v982 = vpop.permute.xlu0 %981
    %v989 = vsel %vm301, %v917, %v934
    %v990 = vsel %vm301, %v918, %v936
    %v991 = vsel %vm301, %v919, %v938
    %v992 = vsel %vm301, %v920, %v940
    %v993 = vsel %vm301, %v921, %v942
    %v994 = vsel %vm301, %v922, %v944
    %vm995 = vcmask 523264
    %v996 = vsel %vm995, %v989, %v953
    %v997 = vsel %vm995, %v990, %v955
    %v998 = vsel %vm995, %v991, %v957
    %v999 = vsel %vm995, %v992, %v959
    %v1000 = vsel %vm995, %v993, %v961
    %v1001 = vsel %vm995, %v994, %v963
    %vm1002 = vcmask 785408
    %v1003 = vsel %vm1002, %v996, %v972
    %v1004 = vsel %vm1002, %v997, %v974
    %v1005 = vsel %vm1002, %v998, %v976
    %v1006 = vsel %vm1002, %v999, %v978
    %v1007 = vsel %vm1002, %v1000, %v980
    %v1008 = vsel %vm1002, %v1001, %v982
    %v1009 = vld [vmem:[%s3] sm:$0xff]
    %v1010 = vld [vmem:[%s3 + $0x8] sm:$0xff]
    %v1011 = vld [vmem:[%s3 + $0x10] sm:$0xff]
    %v1012 = vld [vmem:[%s3 + $0x18] sm:$0xff]
    %v1013 = vld [vmem:[%s3 + $0x20] sm:$0xff]
    %v1014 = vld [vmem:[%s3 + $0x28] sm:$0xff]
    %v1015 = vld [vmem:[%s3 + $0x30] sm:$0xff]
    %v1016 = vld [vmem:[%s3 + $0x38] sm:$0xff]
    %v1017 = vld [vmem:[%s3 + $0x40] sm:$0xff]
    %v1018 = vld [vmem:[%s3 + $0x48] sm:$0xff]
    %v1019 = vld [vmem:[%s3 + $0x50] sm:$0xff]
    %v1020 = vld [vmem:[%s3 + $0x58] sm:$0xff]
    %v1021 = vld [vmem:[%s3 + $0x60] sm:$0xff]
    %v1022 = vld [vmem:[%s3 + $0x68] sm:$0xff]
    %v1023 = vld [vmem:[%s3 + $0x70] sm:$0xff]
    %v1024 = vld [vmem:[%s3 + $0x78] sm:$0xff]
    %v1025 = vld [vmem:[%s3 + $0x80] sm:$0xff]
    %v1026 = vld [vmem:[%s3 + $0x88] sm:$0xff]
    %v1027 = vld [vmem:[%s3 + $0x90] sm:$0xff]
    %v1028 = vld [vmem:[%s3 + $0x98] sm:$0xff]
    %v1029 = vld [vmem:[%s5] sm:$0x1]
    %v1030 = vld [vmem:[%s5 + $0x1] sm:$0x1]
    %v1031 = vld [vmem:[%s5 + $0x2] sm:$0x1]
    %v1032 = vld [vmem:[%s5 + $0x3] sm:$0x1]
    %v1033 = vld [vmem:[%s5 + $0x4] sm:$0x1]
    %v1034 = vld [vmem:[%s5 + $0x5] sm:$0x1]
    %v1041 = vlaneseq
    %v1042 = vshrl.u32 %v1041, 7
    %v1043 = vsub.s32 0, %v1042
    %v1044 = vrot.slane %v1029, %v1043
    %v1045 = vlaneseq
    %v1046 = vshrl.u32 %v1045, 7
    %v1047 = vsub.s32 0, %v1046
    %v1048 = vrot.slane %v1030, %v1047
    %v1049 = vlaneseq
    %v1050 = vshrl.u32 %v1049, 7
    %v1051 = vsub.s32 0, %v1050
    %v1052 = vrot.slane %v1031, %v1051
    %v1053 = vlaneseq
    %v1054 = vshrl.u32 %v1053, 7
    %v1055 = vsub.s32 0, %v1054
    %v1056 = vrot.slane %v1032, %v1055
    %v1057 = vlaneseq
    %v1058 = vshrl.u32 %v1057, 7
    %v1059 = vsub.s32 0, %v1058
    %v1060 = vrot.slane %v1033, %v1059
    %v1061 = vlaneseq
    %v1062 = vshrl.u32 %v1061, 7
    %v1063 = vsub.s32 0, %v1062
    %v1064 = vrot.slane %v1034, %v1063
    %v1072 = vcombine.low %v1003, %v921
    %v1074 = vunpack.c.l.s4 1983009808
    %v1075 = vunpack.c.0.s8 %v1074
    %v1076 = vlaneseq
    %v1077 = vshrl.u32 %v1076, 7
    %v1078 = vsub.s32 %v1075, %v1077
    %v1079 = vrot.slane %v1072, %v1078
    %v1080 = vcombine.low %v1004, %v922
    %v1082 = vunpack.c.l.s4 1983009808
    %v1083 = vunpack.c.0.s8 %v1082
    %v1084 = vlaneseq
    %v1085 = vshrl.u32 %v1084, 7
    %v1086 = vsub.s32 %v1083, %v1085
    %v1087 = vrot.slane %v1080, %v1086
    %v1088 = vcombine.low %v1005, %v923
    %v1090 = vunpack.c.l.s4 1983009808
    %v1091 = vunpack.c.0.s8 %v1090
    %v1092 = vlaneseq
    %v1093 = vshrl.u32 %v1092, 7
    %v1094 = vsub.s32 %v1091, %v1093
    %v1095 = vrot.slane %v1088, %v1094
    %v1096 = vcombine.low %v1006, %v924
    %v1098 = vunpack.c.l.s4 1983009808
    %v1099 = vunpack.c.0.s8 %v1098
    %v1100 = vlaneseq
    %v1101 = vshrl.u32 %v1100, 7
    %v1102 = vsub.s32 %v1099, %v1101
    %v1103 = vrot.slane %v1096, %v1102
    %v1104 = vcombine.low %v1007, %v925
    %v1106 = vunpack.c.l.s4 1983009808
    %v1107 = vunpack.c.0.s8 %v1106
    %v1108 = vlaneseq
    %v1109 = vshrl.u32 %v1108, 7
    %v1110 = vsub.s32 %v1107, %v1109
    %v1111 = vrot.slane %v1104, %v1110
    %v1112 = vcombine.low %v1008, %v926
    %v1114 = vunpack.c.l.s4 1983009808
    %v1115 = vunpack.c.0.s8 %v1114
    %v1116 = vlaneseq
    %v1117 = vshrl.u32 %v1116, 7
    %v1118 = vsub.s32 %v1115, %v1117
    %v1119 = vrot.slane %v1112, %v1118
    %v1120 = vcombine.low %v1079, %v1087
    %v1121 = vcombine.low %v1095, %v1103
    %v1123 = vunpack.c.l.s4 1983009808
    %v1124 = vunpack.c.0.s8 %v1123
    %v1125 = vlaneseq
    %v1126 = vshrl.u32 %v1125, 7
    %v1127 = vsub.s32 %v1124, %v1126
    %v1128 = vrot.slane %v1120, %v1127
    %v1130 = vunpack.c.l.s4 1983009808
    %v1131 = vunpack.c.0.s8 %v1130
    %v1132 = vlaneseq
    %v1133 = vshrl.u32 %v1132, 7
    %v1134 = vsub.s32 %v1131, %v1133
    %v1135 = vrot.slane %v1121, %v1134
    %v1136 = vcombine.low %v1128, %v1135
    %v1137 = vcombine.high %v1128, %v1135
    %v1138 = vcombine.low %v1111, %v1119
    %v1140 = vunpack.c.l.s4 1983009808
    %v1141 = vunpack.c.0.s8 %v1140
    %v1142 = vlaneseq
    %v1143 = vshrl.u32 %v1142, 7
    %v1144 = vsub.s32 %v1141, %v1143
    %v1145 = vrot.slane %v1138, %v1144
    %v1146 = vcombine.high %v1145, %v1145
    %v1149 = vcombine.low %v1044, %v1048
    %v1150 = vcombine.low %v1052, %v1056
    %v1152 = vunpack.c.l.s4 1983009808
    %v1153 = vunpack.c.0.s8 %v1152
    %v1154 = vlaneseq
    %v1155 = vshrl.u32 %v1154, 7
    %v1156 = vsub.s32 %v1153, %v1155
    %v1157 = vrot.slane %v1149, %v1156
    %v1159 = vunpack.c.l.s4 1983009808
    %v1160 = vunpack.c.0.s8 %v1159
    %v1161 = vlaneseq
    %v1162 = vshrl.u32 %v1161, 7
    %v1163 = vsub.s32 %v1160, %v1162
    %v1164 = vrot.slane %v1150, %v1163
    %v1165 = vcombine.low %v1157, %v1164
    %v1166 = vcombine.low %v1060, %v1064
    %v1168 = vunpack.c.l.s4 1983009808
    %v1169 = vunpack.c.0.s8 %v1168
    %v1170 = vlaneseq
    %v1171 = vshrl.u32 %v1170, 7
    %v1172 = vsub.s32 %v1169, %v1171
    %v1173 = vrot.slane %v1166, %v1172
    %v1176 = vsel %vm301, %v1137, 0
    %v1178 = vsel %vm301, %v1146, 0
    %1180 = vmatprep.subr.mxu0 0.0
    %1181 = vmatpush1.msra.mxu0 %v1009
    %1182 = vmatprep.subr.mxu0 0.0
    %1183 = vmatpush1.msra.mxu0 %v1010
    %1184 = vmatprep.subr.mxu0 0.0
    %1185 = vmatpush1.msra.mxu0 %v1011
    %1186 = vmatprep.subr.mxu0 0.0
    %1187 = vmatpush1.msra.mxu0 %v1012
    %1188 = vmatprep.subr.mxu0 0.0
    %1189 = vmatpush1.msra.mxu0 %v1013
    %1190 = vmatprep.subr.mxu0 0.0
    %1191 = vmatpush1.msra.mxu0 %v1014
    %1192 = vmatprep.subr.mxu0 0.0
    %1193 = vmatpush1.msra.mxu0 %v1015
    %1194 = vmatprep.subr.mxu0 0.0
    %1195 = vmatpush1.msra.mxu0 %v1016
    %1196 = vmatprep.subr.mxu0 0.0
    %1197 = vmatpush1.msra.mxu0 %v1017
    %1198 = vmatprep.subr.mxu0 0.0
    %1199 = vmatpush1.msra.mxu0 %v1018
    %1200 = vmatprep.subr.mxu0 0.0
    %1201 = vmatpush1.msra.mxu0 %v1019
    %1202 = vmatprep.subr.mxu0 0.0
    %1203 = vmatpush1.msra.mxu0 %v1020
    %1204 = vmatprep.subr.mxu0 0.0
    %1205 = vmatpush1.msra.mxu0 %v1021
    %1206 = vmatprep.subr.mxu0 0.0
    %1207 = vmatpush1.msra.mxu0 %v1022
    %1208 = vmatprep.subr.mxu0 0.0
    %1209 = vmatpush1.msra.mxu0 %v1023
    %1210 = vmatprep.subr.mxu0 0.0
    %1211 = vmatpush1.msra.mxu0 %v1024
    %1212 = vmatprep.subr.mxu0 0.0
    %1213 = vmatpush1.msra.mxu0 %v1025
    %1214 = vmatprep.subr.mxu0 0.0
    %1215 = vmatpush1.msra.mxu0 %v1026
    %1216 = vmatprep.subr.mxu0 0.0
    %1217 = vmatpush1.msra.mxu0 %v1027
    %1218 = vmatprep.subr.mxu0 0.0
    %1219 = vmatpush1.msra.mxu0 %v1028
    %1220 = vmatprep.subr.mxu0 0.0
    %1221 = vmatpush1.msra.mxu0 0.0
    %1222 = vmatprep.subr.mxu0 0.0
    %1223 = vmatpush1.msra.mxu0 0.0
    %1224 = vmatprep.subr.mxu0 0.0
    %1225 = vmatpush1.msra.mxu0 0.0
    %1226 = vmatprep.subr.mxu0 0.0
    %1227 = vmatpush1.msra.mxu0 0.0
    %1228 = vmatprep.subr.mxu0 0.0
    %1229 = vmatpush1.msra.mxu0 0.0
    %1230 = vmatprep.subr.mxu0 0.0
    %1231 = vmatpush1.msra.mxu0 0.0
    %1232 = vmatprep.subr.mxu0 0.0
    %1233 = vmatpush1.msra.mxu0 0.0
    %1234 = vmatprep.subr.mxu0 0.0
    %1235 = vmatpush1.msra.mxu0 0.0
    %1236 = vmatprep.subr.mxu0 0.0
    %1237 = vmatpush1.msra.mxu0 0.0
    %1238 = vmatprep.subr.mxu0 0.0
    %1239 = vmatpush1.msra.mxu0 0.0
    %1240 = vmatprep.subr.mxu0 0.0
    %1241 = vmatpush1.msra.mxu0 0.0
    %1242 = vmatprep.subr.mxu0 0.0
    %1243 = vmatpush1.msra.mxu0 0.0
    %1244 = vmatprep.mubr.f32.mxu0 %v1176
    %1245 = vmatmul.mubr.f32.gmra.mrb[0].mxu0 %v1136
    %v1246 = vpop.f32.mrb[0].mxu0
    %v1247 = vadd.f32 %v1165, %v1246
    %v1248 = vpop.f32.mrb[0].mxu0
    %1249 = vmatprep.mubr.f32.mxu0 %v1178
    %1250 = vmatmul.mubr.f32.gmra.mrb[0].mxu0 %v1145
    %v1251 = vpop.f32.mrb[0].mxu0
    %v1252 = vadd.f32 %v1173, %v1251
    %v1253 = vpop.f32.mrb[0].mxu0
    %1254 = vdwg.mxu0
    %v1257 = vcombine.high %v1247, %v1247
    %v1259 = vunpack.c.l.s4 1983009808
    %v1260 = vunpack.c.0.s8 %v1259
    %v1261 = vlaneseq
    %v1262 = vshrl.u32 %v1261, 7
    %v1263 = vsub.s32 %v1260, %v1262
    %v1264 = vrot.slane %v1247, %v1263
    %v1266 = vunpack.c.l.s4 1983009808
    %v1267 = vunpack.c.0.s8 %v1266
    %v1268 = vlaneseq
    %v1269 = vshrl.u32 %v1268, 7
    %v1270 = vsub.s32 %v1267, %v1269
    %v1271 = vrot.slane %v1257, %v1270
    %v1272 = vcombine.high %v1264, %v1264
    %v1273 = vcombine.high %v1271, %v1271
    %v1275 = vunpack.c.l.s4 1983009808
    %v1276 = vunpack.c.0.s8 %v1275
    %v1277 = vlaneseq
    %v1278 = vshrl.u32 %v1277, 7
    %v1279 = vsub.s32 %v1276, %v1278
    %v1280 = vrot.slane %v1252, %v1279
    %v1281 = vcombine.high %v1280, %v1280
    %vm1288 = vcmask 386048
    %v1289 = vsel %vm1288, %v1264, -inf
    %v1290 = vsel %vm1288, %v1272, -inf
    %v1291 = vsel %vm1288, %v1271, -inf
    %v1292 = vsel %vm1288, %v1273, -inf
    %v1293 = vsel %vm1288, %v1280, -inf
    %v1294 = vmax.f32 %v1289, %v1293
    %v1295 = vsel %vm1288, %v1281, -inf
    %v1296 = vmax.f32 %v1290, %v1295
    %v1297 = vmax.f32 %v1294, %v1296
    %v1298 = vmax.f32 %v1291, %v1292
    %v1299 = vmax.f32 %v1297, %v1298
    %v1300 = vld [vmem:[%s4] sm:$0x1]
    %v1302 = vlaneseq
    %v1303 = vshrl.u32 %v1302, 7
    %v1304 = vsub.s32 0, %v1303
    %v1305 = vrot.slane %v1300, %v1304
    %v1307 = vadd.f32 %v1299, %v1305
    %v1310 = vunpack.c.l.s4 1983009808
    %v1311 = vunpack.c.0.s8 %v1310
    %v1312 = vlaneseq
    %v1313 = vshrl.u32 %v1312, 7
    %v1314 = vsub.s32 %v1311, %v1313
    %v1315 = vrot.slane %v1307, %v1314
    %1316 = vrot.lane.b32.xlu0 %v1315, 32
    %v1317 = vpop.permute.xlu0 %1316
    %v1319 = vsel %vm301, %v914, %v1317
    %v1320 = vld [vmem:[%s6] sm:$0xff]
    %v1321 = vld [vmem:[%s6 + $0x8] sm:$0xff]
    %v1322 = vld [vmem:[%s6 + $0x10] sm:$0xff]
    %v1323 = vld [vmem:[%s6 + $0x18] sm:$0xff]
    %v1324 = vld [vmem:[%s6 + $0x20] sm:$0xff]
    %v1325 = vld [vmem:[%s6 + $0x28] sm:$0xff]
    %v1326 = vld [vmem:[%s6 + $0x30] sm:$0xff]
    %v1327 = vld [vmem:[%s6 + $0x38] sm:$0xff]
    %v1328 = vld [vmem:[%s6 + $0x40] sm:$0xff]
    %v1329 = vld [vmem:[%s6 + $0x48] sm:$0xff]
    %v1330 = vld [vmem:[%s7] sm:$0x1]
    %v1332 = vlaneseq
    %v1333 = vshrl.u32 %v1332, 7
    %v1334 = vsub.s32 0, %v1333
    %v1335 = vrot.slane %v1330, %v1334
    %vm1337 = vcmask 654336
    %v1339 = vsel %vm1337, %v1319, 0
    %1341 = vmatprep.subr.mxu0 0.0
    %1342 = vmatpush1.msra.mxu0 %v1320
    %1343 = vmatprep.subr.mxu0 0.0
    %1344 = vmatpush1.msra.mxu0 %v1321
    %1345 = vmatprep.subr.mxu0 0.0
    %1346 = vmatpush1.msra.mxu0 %v1322
    %1347 = vmatprep.subr.mxu0 0.0
    %1348 = vmatpush1.msra.mxu0 %v1323
    %1349 = vmatprep.subr.mxu0 0.0
    %1350 = vmatpush1.msra.mxu0 %v1324
    %1351 = vmatprep.subr.mxu0 0.0
    %1352 = vmatpush1.msra.mxu0 %v1325
    %1353 = vmatprep.subr.mxu0 0.0
    %1354 = vmatpush1.msra.mxu0 %v1326
    %1355 = vmatprep.subr.mxu0 0.0
    %1356 = vmatpush1.msra.mxu0 %v1327
    %1357 = vmatprep.subr.mxu0 0.0
    %1358 = vmatpush1.msra.mxu0 %v1328
    %1359 = vmatprep.subr.mxu0 0.0
    %1360 = vmatpush1.msra.mxu0 %v1329
    %1361 = vmatprep.subr.mxu0 0.0
    %1362 = vmatpush1.msra.mxu0 0.0
    %1363 = vmatprep.subr.mxu0 0.0
    %1364 = vmatpush1.msra.mxu0 0.0
    %1365 = vmatprep.subr.mxu0 0.0
    %1366 = vmatpush1.msra.mxu0 0.0
    %1367 = vmatprep.subr.mxu0 0.0
    %1368 = vmatpush1.msra.mxu0 0.0
    %1369 = vmatprep.subr.mxu0 0.0
    %1370 = vmatpush1.msra.mxu0 0.0
    %1371 = vmatprep.subr.mxu0 0.0
    %1372 = vmatpush1.msra.mxu0 0.0
    %1373 = vmatprep.subr.mxu0 0.0
    %1374 = vmatpush1.msra.mxu0 0.0
    %1375 = vmatprep.subr.mxu0 0.0
    %1376 = vmatpush1.msra.mxu0 0.0
    %1377 = vmatprep.subr.mxu0 0.0
    %1378 = vmatpush1.msra.mxu0 0.0
    %1379 = vmatprep.subr.mxu0 0.0
    %1380 = vmatpush1.msra.mxu0 0.0
    %1381 = vmatprep.subr.mxu0 0.0
    %1382 = vmatpush1.msra.mxu0 0.0
    %1383 = vmatprep.subr.mxu0 0.0
    %1384 = vmatpush1.msra.mxu0 0.0
    %1385 = vmatprep.subr.mxu0 0.0
    %1386 = vmatpush1.msra.mxu0 0.0
    %1387 = vmatprep.subr.mxu0 0.0
    %1388 = vmatpush1.msra.mxu0 0.0
    %1389 = vmatprep.subr.mxu0 0.0
    %1390 = vmatpush1.msra.mxu0 0.0
    %1391 = vmatprep.subr.mxu0 0.0
    %1392 = vmatpush1.msra.mxu0 0.0
    %1393 = vmatprep.subr.mxu0 0.0
    %1394 = vmatpush1.msra.mxu0 0.0
    %1395 = vmatprep.subr.mxu0 0.0
    %1396 = vmatpush1.msra.mxu0 0.0
    %1397 = vmatprep.subr.mxu0 0.0
    %1398 = vmatpush1.msra.mxu0 0.0
    %1399 = vmatprep.subr.mxu0 0.0
    %1400 = vmatpush1.msra.mxu0 0.0
    %1401 = vmatprep.subr.mxu0 0.0
    %1402 = vmatpush1.msra.mxu0 0.0
    %1403 = vmatprep.subr.mxu0 0.0
    %1404 = vmatpush1.msra.mxu0 0.0
    %1405 = vmatprep.mubr.f32.mxu0 0.0
    %1406 = vmatmul.mubr.f32.gmra.mrb[0].mxu0 %v1339
    %v1407 = vpop.f32.mrb[0].mxu0
    %v1408 = vadd.f32 %v1335, %v1407
    %v1409 = vpop.f32.mrb[0].mxu0
    %1410 = vdwg.mxu0
    %vm1411 = vcmask 9216
    %1412 = vst.msk [vmem:[#allocation3] sm:$0x3] %vm1411, %v1408
    // Predicated region
    $region34: #{forward.1} parent=1 // pred_check
      _
    $region35: #{forward.1} parent=1 // pred_check_branch
      %1414 = sbr.rel (0) target = $region37
    $region36: #{forward.1} parent=1 // pred_region
      %s1416 = ssub.s32 32, 32
      %1417 = vsyncadd [#allocation4], %s1416
      %s1419 = sshll.u32 [#allocation3], 4
      %s1420 = int_to_ptr.vmem [resolvable:$true] %s1419
      %1422 = dma.vmem_to_hbm [thread:$0]  %s1420, 32, %s8, [#allocation4]
    $region37: #{forward.1} parent=1 // pred_fallthru
      _
    // Predicated region
    $region38: #{forward.1} parent=1 // pred_check
      _
    $region39: #{forward.1} parent=1 // pred_check_branch
      %1424 = sbr.rel (0) target = $region41
    $region40: #{forward.1} parent=1 // pred_region
      %1425 = dma.done [#allocation4], 32
    $region41: #{forward.1} parent=1 // pred_fallthru
      _
    %1426 = vsyncpa [#allocation4], 1

</llo_original>
